<compile_context>
chip_gen: v7x
topology: tpu7x:2x2x1
jax: 0.10.0
libtpu: 0.0.40
codegen_flags: <defaults>
</compile_context>

<pallas_src>
import functools
import math

import jax
import jax.numpy as jnp
from jax.experimental import pallas as pl
from jax.experimental.pallas import tpu as pltpu

LANE = 128


def _fused_actor_critic_kernel(
    state_ref, noise_ref, sel_ref, std_ref,
    w1_ref, b1_ref, w2_ref, b2_ref, w3_ref, b3_ref,
    out_ref, *, num_actions):
    """One batch tile: fused actor+critic MLPs + diag-Gaussian sample/log_prob."""
    A = num_actions
    x = state_ref[...].astype(jnp.bfloat16)                      # (TB, D)

    # Fused actor||critic layer 1 -> (TB, F1p); lanes [0,H1) actor, [H1,2H1) critic.
    h1 = jnp.dot(x, w1_ref[...], preferred_element_type=jnp.float32) + b1_ref[...]
    h1 = jnp.maximum(h1, 0.0)

    # Block-diagonal layer 2 -> (TB, F2p) (padded to a full 128-lane multiple).
    h2 = jnp.dot(h1.astype(jnp.bfloat16), w2_ref[...],
                 preferred_element_type=jnp.float32) + b2_ref[...]
    h2 = jnp.maximum(h2, 0.0)

    # Block-diagonal layer 3, padded to a 128-lane output slab:
    #   cols [0,A): actor pre-tanh mean, col A: log-prob constant (via bias),
    #   col A+1: critic value, cols >= A+2: zeros.
    z = jnp.dot(h2.astype(jnp.bfloat16), w3_ref[...],
                preferred_element_type=jnp.float32) + b3_ref[...]

    col = jax.lax.broadcasted_iota(jnp.int32, z.shape, dimension=1)
    # tanh only on the actor-mean lanes; value / const lanes pass through.
    t = jnp.where(col < A, jnp.tanh(z), z)

    # Narrow (TB, A_pad) noise -> exact lane placement into the 128-wide slab
    # via a one-hot f32 matmul (HIGHEST precision => bit-exact copy of eps).
    eps = noise_ref[...]                                          # (TB, A_pad) f32
    eps_slab = jnp.dot(eps, sel_ref[...],
                       preferred_element_type=jnp.float32,
                       precision=jax.lax.Precision.HIGHEST)       # (TB, 128)
    sampled = t + std_ref[...] * eps_slab                         # actor lanes -> action

    # diff = action - mean = std*eps exactly => maha = sum(eps^2)
    # (eps_slab is zero outside the actor lanes, so the 128-lane reduce is exact).
    maha = jnp.sum(eps_slab * eps_slab, axis=-1, keepdims=True)   # (TB, 1)
    out_ref[...] = sampled + jnp.where(col == A, -0.5 * maha, 0.0)


def prepare_fused_params(params, action_var):
    """One-time fusion of actor+critic weights into 3 lane-dense MXU matrices."""
    D, H1 = params["aw1"].shape          # H1 = 2*hidden_dim
    H2 = params["aw2"].shape[1]          # hidden_dim
    A = params["aw3"].shape[1]           # num_actions
    F1, F2 = 2 * H1, 2 * H2
    F1p = LANE * pl.cdiv(F1, LANE)
    F2p = LANE * pl.cdiv(F2, LANE)
    out_w = LANE * pl.cdiv(A + 2, LANE)
    a_pad = 8 * pl.cdiv(A, 8)            # noise kept narrow but sublane-aligned

    lp_const = -0.5 * (jnp.sum(jnp.log(action_var)) + A * math.log(2.0 * math.pi))

    # Layer 1: actor||critic concatenation along the output (lane) axis, padded.
    w1 = jnp.zeros((D, F1p), jnp.float32)
    w1 = w1.at[:, :H1].set(params["aw1"]).at[:, H1:F1].set(params["cw1"])
    b1 = jnp.zeros((1, F1p), jnp.float32)
    b1 = b1.at[:, :H1].set(params["ab1"]).at[:, H1:F1].set(params["cb1"])

    # Layer 2: block-diagonal, padded to a 128-lane multiple output.
    w2 = jnp.zeros((F1p, F2p), jnp.float32)
    w2 = w2.at[:H1, :H2].set(params["aw2"]).at[H1:F1, H2:F2].set(params["cw2"])
    b2 = jnp.zeros((1, F2p), jnp.float32)
    b2 = b2.at[:, :H2].set(params["ab2"]).at[:, H2:F2].set(params["cb2"])

    # Layer 3: block-diagonal, padded to a lane-dense 128-wide output slab.
    w3 = jnp.zeros((F2p, out_w), jnp.float32)
    w3 = w3.at[:H2, :A].set(params["aw3"]).at[H2:F2, A + 1].set(params["cw3"][:, 0])
    b3 = jnp.zeros((1, out_w), jnp.float32)
    b3 = b3.at[0, :A].set(params["ab3"][0])
    b3 = b3.at[0, A].set(lp_const)                 # log-prob constant rides in the bias
    b3 = b3.at[0, A + 1].set(params["cb3"][0, 0])

    std_pad = jnp.zeros((1, out_w), jnp.float32).at[0, :A].set(jnp.sqrt(action_var))
    # One-hot scatter matrix: lane j of the slab <- noise lane j (j < A).
    sel = jnp.zeros((a_pad, out_w), jnp.float32)
    sel = sel.at[jnp.arange(A), jnp.arange(A)].set(1.0)

    return dict(
        w1=w1.astype(jnp.bfloat16), b1=b1,
        w2=w2.astype(jnp.bfloat16), b2=b2,
        w3=w3.astype(jnp.bfloat16), b3=b3,
        std=std_pad, sel=sel,
        num_actions=int(A), a_pad=int(a_pad), out_w=int(out_w),
    )


def actor_critic_forward(state, noise, fused, *, block_batch=1024):
    """Returns (action, action_logprob, state_val) like ActorCritic.forward."""
    B, D = state.shape
    A = fused["num_actions"]
    Ap = fused["a_pad"]
    out_w = fused["out_w"]

    # Adaptive tile: one tile for small batches, up to `block_batch` rows otherwise.
    tb = min(block_batch, 8 * pl.cdiv(B, 8))
    n_tiles = pl.cdiv(B, tb)
    Bp = n_tiles * tb

    state_p = state if Bp == B else jnp.pad(state, ((0, Bp - B), (0, 0)))
    noise_p = jnp.pad(noise, ((0, Bp - B), (0, Ap - A)))   # narrow, sublane-aligned

    sel, std, w1, b1, w2, b2, w3, b3 = (
        fused[k] for k in ("sel", "std", "w1", "b1", "w2", "b2", "w3", "b3"))

    kernel = functools.partial(_fused_actor_critic_kernel, num_actions=A)

    def const_spec(arr):
        # Weights / biases / scatter matrix stay VMEM-resident across all tiles.
        return pl.BlockSpec(arr.shape, lambda i: (0, 0))

    packed = pl.pallas_call(
        kernel,
        out_shape=jax.ShapeDtypeStruct((Bp, out_w), jnp.float32),
        grid_spec=pl.GridSpec(
            grid=(n_tiles,),
            in_specs=[
                pl.BlockSpec((tb, D), lambda i: (i, 0)),    # state tile
                pl.BlockSpec((tb, Ap), lambda i: (i, 0)),   # narrow noise tile
                const_spec(sel), const_spec(std),
                const_spec(w1), const_spec(b1),
                const_spec(w2), const_spec(b2),
                const_spec(w3), const_spec(b3),
            ],
            out_specs=pl.BlockSpec((tb, out_w), lambda i: (i, 0)),
        ),
        compiler_params=pltpu.CompilerParams(
            dimension_semantics=("parallel",)),
    )(state_p, noise_p, sel, std, w1, b1, w2, b2, w3, b3)

    action = packed[:B, :A]
    logprob = packed[:B, A]          # (B,), like torch dist.log_prob
    value = packed[:B, A + 1:A + 2]  # (B, 1), like critic output
    return action, logprob, value


def init_params(key, num_inputs, num_actions, hidden_dim):
    """nn.Linear-style init (uniform +-1/sqrt(fan_in)); weights stored (in, out)."""
    dims = [(num_inputs, 2 * hidden_dim), (2 * hidden_dim, hidden_dim),
            (hidden_dim, num_actions),
            (num_inputs, 2 * hidden_dim), (2 * hidden_dim, hidden_dim),
            (hidden_dim, 1)]
    names = [("aw1", "ab1"), ("aw2", "ab2"), ("aw3", "ab3"),
             ("cw1", "cb1"), ("cw2", "cb2"), ("cw3", "cb3")]
    params = {}
    for (wn, bn), (fin, fout) in zip(names, dims):
        key, kw, kb = jax.random.split(key, 3)
        bound = 1.0 / math.sqrt(fin)
        params[wn] = jax.random.uniform(kw, (fin, fout), jnp.float32, -bound, bound)
        params[bn] = jax.random.uniform(kb, (1, fout), jnp.float32, -bound, bound)
    return params


if __name__ == "__main__":
    B = 200           # batch (not a multiple of 8*? -> exercises adaptive tiling)
    NUM_INPUTS = 16   # state dim
    NUM_ACTIONS = 4   # action dim
    HIDDEN = 32       # hidden_dim (layers are 2*HIDDEN then HIDDEN wide)
    ACTION_STD_INIT = 0.6

    key = jax.random.PRNGKey(0)
    key, k_state, k_noise, k_params = jax.random.split(key, 4)

    state = jax.random.normal(k_state, (B, NUM_INPUTS), jnp.float32)
    noise = jax.random.normal(k_noise, (B, NUM_ACTIONS), jnp.float32)
    action_var = jnp.full((NUM_ACTIONS,), ACTION_STD_INIT * ACTION_STD_INIT,
                          dtype=jnp.float32)
    params = init_params(k_params, NUM_INPUTS, NUM_ACTIONS, HIDDEN)

    # TODO(synk): torch samples the Gaussian noise inside forward(); here it is an
    # explicit input for determinism (pltpu.prng_* could generate it in-kernel).
    fused = prepare_fused_params(params, action_var)
    action, logprob, value = actor_critic_forward(state, noise, fused)
    jax.block_until_ready((action, logprob, value))

    # ---- references ----
    def ref_forward(cast_bf16):
        def lin(x, w, b):
            if cast_bf16:
                x = x.astype(jnp.bfloat16)
                w = w.astype(jnp.bfloat16)
            return jnp.dot(x, w, preferred_element_type=jnp.float32) + b
        h = jnp.maximum(lin(state, params["aw1"], params["ab1"]), 0.0)
        h = jnp.maximum(lin(h, params["aw2"], params["ab2"]), 0.0)
        mean = jnp.tanh(lin(h, params["aw3"], params["ab3"]))
        c = jnp.maximum(lin(state, params["cw1"], params["cb1"]), 0.0)
        c = jnp.maximum(lin(c, params["cw2"], params["cb2"]), 0.0)
        val = lin(c, params["cw3"], params["cb3"])
        act = mean + jnp.sqrt(action_var) * noise
        # (act - mean)^2 / var == noise^2 exactly (up to rounding)
        lp = -0.5 * (jnp.sum(noise * noise, axis=-1)
                     + jnp.sum(jnp.log(action_var))
                     + NUM_ACTIONS * math.log(2.0 * math.pi))
        return act, lp, val

    # Tight check against a reference using the same bf16-matmul recipe.
    a_bf, lp_bf, v_bf = ref_forward(cast_bf16=True)
    assert jnp.allclose(action, a_bf, atol=5e-3, rtol=5e-3)
    assert jnp.allclose(logprob, lp_bf, atol=1e-4, rtol=1e-4)
    assert jnp.allclose(value, v_bf, atol=5e-3, rtol=5e-3)

    # Loose sanity check against the pure-f32 (PyTorch-equivalent) math.
    a32, lp32, v32 = ref_forward(cast_bf16=False)
    assert jnp.allclose(action, a32, atol=1e-1)
    assert jnp.allclose(logprob, lp32, atol=1e-4, rtol=1e-4)
    assert jnp.allclose(value, v32, atol=1e-1)

    print("KERNEL_OK")
</pallas_src>

<mosaic_0001>
module attributes {stable_mosaic.version = 11 : i64} {
  func.func @_fused_actor_critic_kernel(%arg0: i32, %arg1: memref<200x16xf32, #tpu.memory_space<vmem>>, %arg2: memref<200x8xf32, #tpu.memory_space<vmem>>, %arg3: memref<8x128xf32, #tpu.memory_space<vmem>>, %arg4: memref<1x128xf32, #tpu.memory_space<vmem>>, %arg5: memref<16x128xbf16, #tpu.memory_space<vmem>>, %arg6: memref<1x128xf32, #tpu.memory_space<vmem>>, %arg7: memref<128x128xbf16, #tpu.memory_space<vmem>>, %arg8: memref<1x128xf32, #tpu.memory_space<vmem>>, %arg9: memref<128x128xbf16, #tpu.memory_space<vmem>>, %arg10: memref<1x128xf32, #tpu.memory_space<vmem>>, %arg11: memref<200x128xf32, #tpu.memory_space<vmem>>) attributes {dimension_semantics = [#tpu.dimension_semantics<parallel>], iteration_bounds = array<i64: 1>, scalar_prefetch = 0 : i64, scratch_operands = 0 : i64, tpu.core_type = #tpu.core_type<tc>, window_params = [{transform_indices = @transform_0, window_bounds = array<i64: 200, 16>}, {transform_indices = @transform_1, window_bounds = array<i64: 200, 8>}, {pipeline_mode = #tpu.pipeline_mode<synchronous>, transform_indices = @transform_2, window_bounds = array<i64: 8, 128>}, {pipeline_mode = #tpu.pipeline_mode<synchronous>, transform_indices = @transform_3, window_bounds = array<i64: 1, 128>}, {pipeline_mode = #tpu.pipeline_mode<synchronous>, transform_indices = @transform_4, window_bounds = array<i64: 16, 128>}, {pipeline_mode = #tpu.pipeline_mode<synchronous>, transform_indices = @transform_5, window_bounds = array<i64: 1, 128>}, {pipeline_mode = #tpu.pipeline_mode<synchronous>, transform_indices = @transform_6, window_bounds = array<i64: 128, 128>}, {pipeline_mode = #tpu.pipeline_mode<synchronous>, transform_indices = @transform_7, window_bounds = array<i64: 1, 128>}, {pipeline_mode = #tpu.pipeline_mode<synchronous>, transform_indices = @transform_8, window_bounds = array<i64: 128, 128>}, {pipeline_mode = #tpu.pipeline_mode<synchronous>, transform_indices = @transform_9, window_bounds = array<i64: 1, 128>}, {transform_indices = @transform_10, window_bounds = array<i64: 200, 128>}]} {
    %c0 = arith.constant 0 : index
    %c0_0 = arith.constant 0 : index
    %0 = vector.load %arg1[%c0, %c0_0] : memref<200x16xf32, #tpu.memory_space<vmem>>, vector<200x16xf32>
    %1 = arith.truncf %0 : vector<200x16xf32> to vector<200x16xbf16>
    %c0_1 = arith.constant 0 : index
    %c0_2 = arith.constant 0 : index
    %2 = vector.load %arg5[%c0_1, %c0_2] : memref<16x128xbf16, #tpu.memory_space<vmem>>, vector<16x128xbf16>
    %cst = arith.constant dense<0.000000e+00> : vector<200x128xf32>
    %3 = tpu.matmul %1, %2, %cst {dimension_numbers = #tpu.dot_dimension_numbers<[1], [0], [0], [1], [0, 0, 1, 1], [], []>} : vector<200x16xbf16>, vector<16x128xbf16>, vector<200x128xf32> -> vector<200x128xf32>
    %c0_3 = arith.constant 0 : index
    %c0_4 = arith.constant 0 : index
    %4 = vector.load %arg6[%c0_3, %c0_4] : memref<1x128xf32, #tpu.memory_space<vmem>>, vector<1x128xf32>
    %5 = vector.broadcast %4 : vector<1x128xf32> to vector<200x128xf32>
    %6 = arith.addf %3, %5 : vector<200x128xf32>
    %cst_5 = arith.constant 0.000000e+00 : f32
    %7 = vector.broadcast %cst_5 : f32 to vector<200x128xf32>
    %8 = arith.maximumf %6, %7 : vector<200x128xf32>
    %9 = arith.truncf %8 : vector<200x128xf32> to vector<200x128xbf16>
    %c0_6 = arith.constant 0 : index
    %c0_7 = arith.constant 0 : index
    %10 = vector.load %arg7[%c0_6, %c0_7] : memref<128x128xbf16, #tpu.memory_space<vmem>>, vector<128x128xbf16>
    %cst_8 = arith.constant dense<0.000000e+00> : vector<200x128xf32>
    %11 = tpu.matmul %9, %10, %cst_8 {dimension_numbers = #tpu.dot_dimension_numbers<[1], [0], [0], [1], [0, 0, 1, 1], [], []>} : vector<200x128xbf16>, vector<128x128xbf16>, vector<200x128xf32> -> vector<200x128xf32>
    %c0_9 = arith.constant 0 : index
    %c0_10 = arith.constant 0 : index
    %12 = vector.load %arg8[%c0_9, %c0_10] : memref<1x128xf32, #tpu.memory_space<vmem>>, vector<1x128xf32>
    %13 = vector.broadcast %12 : vector<1x128xf32> to vector<200x128xf32>
    %14 = arith.addf %11, %13 : vector<200x128xf32>
    %cst_11 = arith.constant 0.000000e+00 : f32
    %15 = vector.broadcast %cst_11 : f32 to vector<200x128xf32>
    %16 = arith.maximumf %14, %15 : vector<200x128xf32>
    %17 = arith.truncf %16 : vector<200x128xf32> to vector<200x128xbf16>
    %c0_12 = arith.constant 0 : index
    %c0_13 = arith.constant 0 : index
    %18 = vector.load %arg9[%c0_12, %c0_13] : memref<128x128xbf16, #tpu.memory_space<vmem>>, vector<128x128xbf16>
    %cst_14 = arith.constant dense<0.000000e+00> : vector<200x128xf32>
    %19 = tpu.matmul %17, %18, %cst_14 {dimension_numbers = #tpu.dot_dimension_numbers<[1], [0], [0], [1], [0, 0, 1, 1], [], []>} : vector<200x128xbf16>, vector<128x128xbf16>, vector<200x128xf32> -> vector<200x128xf32>
    %c0_15 = arith.constant 0 : index
    %c0_16 = arith.constant 0 : index
    %20 = vector.load %arg10[%c0_15, %c0_16] : memref<1x128xf32, #tpu.memory_space<vmem>>, vector<1x128xf32>
    %21 = vector.broadcast %20 : vector<1x128xf32> to vector<200x128xf32>
    %22 = arith.addf %19, %21 : vector<200x128xf32>
    %23 = tpu.iota {dimensions = array<i32: 1>} : vector<200x128xi32>
    %c4_i32 = arith.constant 4 : i32
    %24 = vector.broadcast %c4_i32 : i32 to vector<200x128xi32>
    %25 = arith.cmpi slt, %23, %24 : vector<200x128xi32>
    %26 = math.tanh %22 : vector<200x128xf32>
    %27 = arith.select %25, %26, %22 : vector<200x128xi1>, vector<200x128xf32>
    %c0_17 = arith.constant 0 : index
    %c0_18 = arith.constant 0 : index
    %28 = vector.load %arg2[%c0_17, %c0_18] : memref<200x8xf32, #tpu.memory_space<vmem>>, vector<200x8xf32>
    %c0_19 = arith.constant 0 : index
    %c0_20 = arith.constant 0 : index
    %29 = vector.load %arg3[%c0_19, %c0_20] : memref<8x128xf32, #tpu.memory_space<vmem>>, vector<8x128xf32>
    %cst_21 = arith.constant dense<0.000000e+00> : vector<200x128xf32>
    %30 = tpu.matmul %28, %29, %cst_21 {dimension_numbers = #tpu.dot_dimension_numbers<[1], [0], [0], [1], [0, 0, 1, 1], [], []>, precision = #tpu.contract_precision<fp32>} : vector<200x8xf32>, vector<8x128xf32>, vector<200x128xf32> -> vector<200x128xf32>
    %c0_22 = arith.constant 0 : index
    %c0_23 = arith.constant 0 : index
    %31 = vector.load %arg4[%c0_22, %c0_23] : memref<1x128xf32, #tpu.memory_space<vmem>>, vector<1x128xf32>
    %32 = vector.broadcast %31 : vector<1x128xf32> to vector<200x128xf32>
    %33 = arith.mulf %32, %30 : vector<200x128xf32>
    %34 = arith.addf %27, %33 : vector<200x128xf32>
    %35 = arith.mulf %30, %30 : vector<200x128xf32>
    %cst_24 = arith.constant dense<0.000000e+00> : vector<200xf32>
    %36 = vector.multi_reduction <add>, %35, %cst_24 [1] : vector<200x128xf32> to vector<200xf32>
    %37 = vector.shape_cast %36 : vector<200xf32> to vector<200x1xf32>
    %c4_i32_25 = arith.constant 4 : i32
    %38 = vector.broadcast %c4_i32_25 : i32 to vector<200x128xi32>
    %39 = arith.cmpi eq, %23, %38 : vector<200x128xi32>
    %cst_26 = arith.constant -5.000000e-01 : f32
    %40 = vector.broadcast %cst_26 : f32 to vector<200x1xf32>
    %41 = arith.mulf %40, %37 : vector<200x1xf32>
    %cst_27 = arith.constant 0.000000e+00 : f32
    %42 = vector.shape_cast %41 : vector<200x1xf32> to vector<200x1xf32>
    %43 = vector.broadcast %42 : vector<200x1xf32> to vector<200x128xf32>
    %44 = vector.broadcast %cst_27 : f32 to vector<200x128xf32>
    %45 = arith.select %39, %43, %44 : vector<200x128xi1>, vector<200x128xf32>
    %46 = arith.addf %34, %45 : vector<200x128xf32>
    %c0_28 = arith.constant 0 : index
    %c0_29 = arith.constant 0 : index
    %47 = vector.load %arg11[%c0_28, %c0_29] : memref<200x128xf32, #tpu.memory_space<vmem>>, vector<200x128xf32>
    tpu.vector_store %arg11[%c0_28, %c0_29], %46 {strides = array<i32>} : memref<200x128xf32, #tpu.memory_space<vmem>>, vector<200x128xf32>,
    return
  }
  func.func @transform_0(%arg0: i32) -> (i32, i32) {
    %c0_i32 = arith.constant 0 : i32
    %c0_i32_0 = arith.constant 0 : i32
    return %arg0, %c0_i32 : i32, i32
  }
  func.func @transform_1(%arg0: i32) -> (i32, i32) {
    %c0_i32 = arith.constant 0 : i32
    %c0_i32_0 = arith.constant 0 : i32
    return %arg0, %c0_i32 : i32, i32
  }
  func.func @transform_2(%arg0: i32) -> (i32, i32) {
    %c0_i32 = arith.constant 0 : i32
    %c0_i32_0 = arith.constant 0 : i32
    %c0_i32_1 = arith.constant 0 : i32
    return %c0_i32, %c0_i32_0 : i32, i32
  }
  func.func @transform_3(%arg0: i32) -> (i32, i32) {
    %c0_i32 = arith.constant 0 : i32
    %c0_i32_0 = arith.constant 0 : i32
    %c0_i32_1 = arith.constant 0 : i32
    return %c0_i32, %c0_i32_0 : i32, i32
  }
  func.func @transform_4(%arg0: i32) -> (i32, i32) {
    %c0_i32 = arith.constant 0 : i32
    %c0_i32_0 = arith.constant 0 : i32
    %c0_i32_1 = arith.constant 0 : i32
    return %c0_i32, %c0_i32_0 : i32, i32
  }
  func.func @transform_5(%arg0: i32) -> (i32, i32) {
    %c0_i32 = arith.constant 0 : i32
    %c0_i32_0 = arith.constant 0 : i32
    %c0_i32_1 = arith.constant 0 : i32
    return %c0_i32, %c0_i32_0 : i32, i32
  }
  func.func @transform_6(%arg0: i32) -> (i32, i32) {
    %c0_i32 = arith.constant 0 : i32
    %c0_i32_0 = arith.constant 0 : i32
    %c0_i32_1 = arith.constant 0 : i32
    return %c0_i32, %c0_i32_0 : i32, i32
  }
  func.func @transform_7(%arg0: i32) -> (i32, i32) {
    %c0_i32 = arith.constant 0 : i32
    %c0_i32_0 = arith.constant 0 : i32
    %c0_i32_1 = arith.constant 0 : i32
    return %c0_i32, %c0_i32_0 : i32, i32
  }
  func.func @transform_8(%arg0: i32) -> (i32, i32) {
    %c0_i32 = arith.constant 0 : i32
    %c0_i32_0 = arith.constant 0 : i32
    %c0_i32_1 = arith.constant 0 : i32
    return %c0_i32, %c0_i32_0 : i32, i32
  }
  func.func @transform_9(%arg0: i32) -> (i32, i32) {
    %c0_i32 = arith.constant 0 : i32
    %c0_i32_0 = arith.constant 0 : i32
    %c0_i32_1 = arith.constant 0 : i32
    return %c0_i32, %c0_i32_0 : i32, i32
  }
  func.func @transform_10(%arg0: i32) -> (i32, i32) {
    %c0_i32 = arith.constant 0 : i32
    %c0_i32_0 = arith.constant 0 : i32
    return %arg0, %c0_i32 : i32, i32
  }
}

</mosaic_0001>

<llo_original>
// kernel: tpu_custom_call.1
$region0: #{tpu_custom_call.1}
  #allocation0 [shape = 'u32[]', space=smem, size = 0x4, offset = 0x4, fixed_abs, tag = 'smem constant byte address 0x4 - core index']
  #allocation1 [shape = 'u32[144,128]{1,0:T(1,128)}', space=vmem, size = 0x12000, scoped, tag = 'internal scratch']
  %s0 = inlined_call_operand.vmem [shape: f32[200,16], index: 0, kind: input, shape index: {}]
  %s1 = inlined_call_operand.vmem [shape: f32[200,8], index: 1, kind: input, shape index: {}]
  %s2 = inlined_call_operand.vmem [shape: f32[8,128], index: 2, kind: input, shape index: {}]
  %s3 = inlined_call_operand.vmem [shape: f32[1,128], index: 3, kind: input, shape index: {}]
  %s4 = inlined_call_operand.vmem [shape: bf16[16,128], index: 4, kind: input, shape index: {}]
  %s5 = inlined_call_operand.vmem [shape: f32[1,128], index: 5, kind: input, shape index: {}]
  %s6 = inlined_call_operand.vmem [shape: bf16[128,128], index: 6, kind: input, shape index: {}]
  %s7 = inlined_call_operand.vmem [shape: f32[1,128], index: 7, kind: input, shape index: {}]
  %s8 = inlined_call_operand.vmem [shape: bf16[128,128], index: 8, kind: input, shape index: {}]
  %s9 = inlined_call_operand.vmem [shape: f32[1,128], index: 9, kind: input, shape index: {}]
  %s10 = inlined_call_operand.hbm [shape: f32[200,128], index: 10, kind: output, shape index: {}]
  %s11 = sld [smem:[#allocation0]]
  $region50: #{tpu_custom_call.1} parent=0
    _
  %s13 = ssub.s32 1, %s11
  %s14 = scalar_select 0, %s13, %s11
  $region1: #{tpu_custom_call.1} parent=0
    #allocation2 [shape = 'u8[102400]{0}', space=vmem, size = 0x19000, scoped, tag = 'output window, operand 0, single buffered']
    #allocation3 [shape = 's32[1]{0}', space=sflag, size = 0x4, scoped, tag = 'scoped memory for tpu_custom_call.1']
    %15 = vsyncpa [#allocation3], 0
    // Predicated region
    $region2: #{tpu_custom_call.1} parent=1 // pred_check
      _
    $region3: #{tpu_custom_call.1} parent=1 // pred_check_branch
      %17 = sbr.rel (0) target = $region5
    $region4: #{tpu_custom_call.1} parent=1 // pred_region
      _
    $region5: #{tpu_custom_call.1} parent=1 // pred_fallthru
      _
    // Predicated region
    $region6: #{tpu_custom_call.1} parent=1 // pred_check
      _
    $region7: #{tpu_custom_call.1} parent=1 // pred_check_branch
      %19 = sbr.rel (0) target = $region9
    $region8: #{tpu_custom_call.1} parent=1 // pred_region
      _
    $region9: #{tpu_custom_call.1} parent=1 // pred_fallthru
      _
    // Predicated region
    $region10: #{tpu_custom_call.1} parent=1 // pred_check
      _
    $region11: #{tpu_custom_call.1} parent=1 // pred_check_branch
      %21 = sbr.rel (0) target = $region13
    $region12: #{tpu_custom_call.1} parent=1 // pred_region
      _
    $region13: #{tpu_custom_call.1} parent=1 // pred_fallthru
      _
    // Predicated region
    $region14: #{tpu_custom_call.1} parent=1 // pred_check
      _
    $region15: #{tpu_custom_call.1} parent=1 // pred_check_branch
      %23 = sbr.rel (0) target = $region17
    $region16: #{tpu_custom_call.1} parent=1 // pred_region
      _
    $region17: #{tpu_custom_call.1} parent=1 // pred_fallthru
      _
    // Predicated region
    $region18: #{tpu_custom_call.1} parent=1 // pred_check
      _
    $region19: #{tpu_custom_call.1} parent=1 // pred_check_branch
      %25 = sbr.rel (0) target = $region21
    $region20: #{tpu_custom_call.1} parent=1 // pred_region
      _
    $region21: #{tpu_custom_call.1} parent=1 // pred_fallthru
      _
    // Predicated region
    $region22: #{tpu_custom_call.1} parent=1 // pred_check
      _
    $region23: #{tpu_custom_call.1} parent=1 // pred_check_branch
      %27 = sbr.rel (0) target = $region25
    $region24: #{tpu_custom_call.1} parent=1 // pred_region
      _
    $region25: #{tpu_custom_call.1} parent=1 // pred_fallthru
      _
    // Predicated region
    $region26: #{tpu_custom_call.1} parent=1 // pred_check
      _
    $region27: #{tpu_custom_call.1} parent=1 // pred_check_branch
      %29 = sbr.rel (0) target = $region29
    $region28: #{tpu_custom_call.1} parent=1 // pred_region
      _
    $region29: #{tpu_custom_call.1} parent=1 // pred_fallthru
      _
    // Predicated region
    $region30: #{tpu_custom_call.1} parent=1 // pred_check
      _
    $region31: #{tpu_custom_call.1} parent=1 // pred_check_branch
      %31 = sbr.rel (0) target = $region33
    $region32: #{tpu_custom_call.1} parent=1 // pred_region
      _
    $region33: #{tpu_custom_call.1} parent=1 // pred_fallthru
      _
    // Predicated region
    $region34: #{tpu_custom_call.1} parent=1 // pred_check
      _
    $region35: #{tpu_custom_call.1} parent=1 // pred_check_branch
      %33 = sbr.rel (0) target = $region37
    $region36: #{tpu_custom_call.1} parent=1 // pred_region
      _
    $region37: #{tpu_custom_call.1} parent=1 // pred_fallthru
      _
    // Predicated region
    $region38: #{tpu_custom_call.1} parent=1 // pred_check
      _
    $region39: #{tpu_custom_call.1} parent=1 // pred_check_branch
      %35 = sbr.rel (0) target = $region41
    $region40: #{tpu_custom_call.1} parent=1 // pred_region
      _
    $region41: #{tpu_custom_call.1} parent=1 // pred_fallthru
      _
    %v37 = vld [vmem:[%s0] sm:$0xff]
    %v38 = vld [vmem:[%s0 + $0x8] sm:$0xff]
    %v39 = vld [vmem:[%s0 + $0x10] sm:$0xff]
    %v40 = vld [vmem:[%s0 + $0x18] sm:$0xff]
    %v41 = vld [vmem:[%s0 + $0x20] sm:$0xff]
    %v42 = vld [vmem:[%s0 + $0x28] sm:$0xff]
    %v43 = vld [vmem:[%s0 + $0x30] sm:$0xff]
    %v44 = vld [vmem:[%s0 + $0x38] sm:$0xff]
    %v45 = vld [vmem:[%s0 + $0x40] sm:$0xff]
    %v46 = vld [vmem:[%s0 + $0x48] sm:$0xff]
    %v47 = vld [vmem:[%s0 + $0x50] sm:$0xff]
    %v48 = vld [vmem:[%s0 + $0x58] sm:$0xff]
    %v49 = vld [vmem:[%s0 + $0x60] sm:$0xff]
    %v50 = vld [vmem:[%s0 + $0x68] sm:$0xff]
    %v51 = vld [vmem:[%s0 + $0x70] sm:$0xff]
    %v52 = vld [vmem:[%s0 + $0x78] sm:$0xff]
    %v53 = vld [vmem:[%s0 + $0x80] sm:$0xff]
    %v54 = vld [vmem:[%s0 + $0x88] sm:$0xff]
    %v55 = vld [vmem:[%s0 + $0x90] sm:$0xff]
    %v56 = vld [vmem:[%s0 + $0x98] sm:$0xff]
    %v57 = vld [vmem:[%s0 + $0xa0] sm:$0xff]
    %v58 = vld [vmem:[%s0 + $0xa8] sm:$0xff]
    %v59 = vld [vmem:[%s0 + $0xb0] sm:$0xff]
    %v60 = vld [vmem:[%s0 + $0xb8] sm:$0xff]
    %v61 = vld [vmem:[%s0 + $0xc0] sm:$0xff]
    %v62 = vpack.c.bf16 %v38, %v37
    %v63 = vpack.c.bf16 %v40, %v39
    %v64 = vpack.c.bf16 %v42, %v41
    %v65 = vpack.c.bf16 %v44, %v43
    %v66 = vpack.c.bf16 %v46, %v45
    %v67 = vpack.c.bf16 %v48, %v47
    %v68 = vpack.c.bf16 %v50, %v49
    %v69 = vpack.c.bf16 %v52, %v51
    %v70 = vpack.c.bf16 %v54, %v53
    %v71 = vpack.c.bf16 %v56, %v55
    %v72 = vpack.c.bf16 %v58, %v57
    %v73 = vpack.c.bf16 %v60, %v59
    %v74 = vpack.c.bf16 %v61, %v61
    %v75 = vld [vmem:[%s4] sm:$0xf]
    %v76 = vld [vmem:[%s4 + $0x4] sm:$0xf]
    %v77 = vld [vmem:[%s5] sm:$0x1]
    %v79 = vlaneseq
    %v80 = vshrl.u32 %v79, 7
    %v81 = vsub.s32 0, %v80
    %v82 = vrot.slane %v77, %v81
    %v86 = vunpack.c.l.b16 %v75
    %v87 = vunpack.c.l.b16 %v76
    %v88 = vpack.c.b16 %v87, %v86
    %vm90 = vcmask 130048
    %v92 = vsel %vm90, %v62, 0
    %v95 = vsel %vm90, %v63, 0
    %v98 = vsel %vm90, %v64, 0
    %v101 = vsel %vm90, %v65, 0
    %v104 = vsel %vm90, %v66, 0
    %v107 = vsel %vm90, %v67, 0
    %v110 = vsel %vm90, %v68, 0
    %v113 = vsel %vm90, %v69, 0
    %v116 = vsel %vm90, %v70, 0
    %v119 = vsel %vm90, %v71, 0
    %v122 = vsel %vm90, %v72, 0
    %v125 = vsel %vm90, %v73, 0
    %v128 = vsel %vm90, %v74, 0
    %130 = vmatprep.subr.bf16.mxu0 0
    %131 = vmatpush1.bf16.msra.mxu0 %v88
    %132 = vmatprep.subr.bf16.mxu0 0
    %133 = vmatpush1.bf16.msra.mxu0 0
    %134 = vmatprep.subr.bf16.mxu0 0
    %135 = vmatpush1.bf16.msra.mxu0 0
    %136 = vmatprep.subr.bf16.mxu0 0
    %137 = vmatpush1.bf16.msra.mxu0 0
    %138 = vmatprep.subr.bf16.mxu0 0
    %139 = vmatpush1.bf16.msra.mxu0 0
    %140 = vmatprep.subr.bf16.mxu0 0
    %141 = vmatpush1.bf16.msra.mxu0 0
    %142 = vmatprep.subr.bf16.mxu0 0
    %143 = vmatpush1.bf16.msra.mxu0 0
    %144 = vmatprep.subr.bf16.mxu0 0
    %145 = vmatpush1.bf16.msra.mxu0 0
    %146 = vmatprep.subr.bf16.mxu0 0
    %147 = vmatpush1.bf16.msra.mxu0 0
    %148 = vmatprep.subr.bf16.mxu0 0
    %149 = vmatpush1.bf16.msra.mxu0 0
    %150 = vmatprep.subr.bf16.mxu0 0
    %151 = vmatpush1.bf16.msra.mxu0 0
    %152 = vmatprep.subr.bf16.mxu0 0
    %153 = vmatpush1.bf16.msra.mxu0 0
    %154 = vmatprep.subr.bf16.mxu0 0
    %155 = vmatpush1.bf16.msra.mxu0 0
    %156 = vmatprep.subr.bf16.mxu0 0
    %157 = vmatpush1.bf16.msra.mxu0 0
    %158 = vmatprep.subr.bf16.mxu0 0
    %159 = vmatpush1.bf16.msra.mxu0 0
    %160 = vmatprep.subr.bf16.mxu0 0
    %161 = vmatpush1.bf16.msra.mxu0 0
    %162 = vmatprep.mubr.bf16.mxu0 0
    %163 = vmatmul.mubr.bf16.gmra.mrb[0].mxu0 %v92
    %v164 = vpop.f32.mrb[0].mxu0
    %v165 = vadd.f32 %v82, %v164
    %v166 = vpop.f32.mrb[0].mxu0
    %v167 = vpop.f32.mrb[0].mxu0
    %v168 = vadd.f32 %v82, %v167
    %v169 = vpop.f32.mrb[0].mxu0
    %170 = vmatprep.mubr.bf16.mxu0 0
    %171 = vmatmul.mubr.bf16.gmra.mrb[0].mxu0 %v95
    %v172 = vpop.f32.mrb[0].mxu0
    %v173 = vadd.f32 %v82, %v172
    %v174 = vpop.f32.mrb[0].mxu0
    %v175 = vpop.f32.mrb[0].mxu0
    %v176 = vadd.f32 %v82, %v175
    %v177 = vpop.f32.mrb[0].mxu0
    %178 = vmatprep.mubr.bf16.mxu0 0
    %179 = vmatmul.mubr.bf16.gmra.mrb[0].mxu0 %v98
    %v180 = vpop.f32.mrb[0].mxu0
    %v181 = vadd.f32 %v82, %v180
    %v182 = vpop.f32.mrb[0].mxu0
    %v183 = vpop.f32.mrb[0].mxu0
    %v184 = vadd.f32 %v82, %v183
    %v185 = vpop.f32.mrb[0].mxu0
    %186 = vmatprep.mubr.bf16.mxu0 0
    %187 = vmatmul.mubr.bf16.gmra.mrb[0].mxu0 %v101
    %v188 = vpop.f32.mrb[0].mxu0
    %v189 = vadd.f32 %v82, %v188
    %v190 = vpop.f32.mrb[0].mxu0
    %v191 = vpop.f32.mrb[0].mxu0
    %v192 = vadd.f32 %v82, %v191
    %v193 = vpop.f32.mrb[0].mxu0
    %194 = vmatprep.mubr.bf16.mxu0 0
    %195 = vmatmul.mubr.bf16.gmra.mrb[0].mxu0 %v104
    %v196 = vpop.f32.mrb[0].mxu0
    %v197 = vadd.f32 %v82, %v196
    %v198 = vpop.f32.mrb[0].mxu0
    %v199 = vpop.f32.mrb[0].mxu0
    %v200 = vadd.f32 %v82, %v199
    %v201 = vpop.f32.mrb[0].mxu0
    %202 = vmatprep.mubr.bf16.mxu0 0
    %203 = vmatmul.mubr.bf16.gmra.mrb[0].mxu0 %v107
    %v204 = vpop.f32.mrb[0].mxu0
    %v205 = vadd.f32 %v82, %v204
    %v206 = vpop.f32.mrb[0].mxu0
    %v207 = vpop.f32.mrb[0].mxu0
    %v208 = vadd.f32 %v82, %v207
    %v209 = vpop.f32.mrb[0].mxu0
    %210 = vmatprep.mubr.bf16.mxu0 0
    %211 = vmatmul.mubr.bf16.gmra.mrb[0].mxu0 %v110
    %v212 = vpop.f32.mrb[0].mxu0
    %v213 = vadd.f32 %v82, %v212
    %v214 = vpop.f32.mrb[0].mxu0
    %v215 = vpop.f32.mrb[0].mxu0
    %v216 = vadd.f32 %v82, %v215
    %v217 = vpop.f32.mrb[0].mxu0
    %218 = vmatprep.mubr.bf16.mxu0 0
    %219 = vmatmul.mubr.bf16.gmra.mrb[0].mxu0 %v113
    %v220 = vpop.f32.mrb[0].mxu0
    %v221 = vadd.f32 %v82, %v220
    %v222 = vpop.f32.mrb[0].mxu0
    %v223 = vpop.f32.mrb[0].mxu0
    %v224 = vadd.f32 %v82, %v223
    %v225 = vpop.f32.mrb[0].mxu0
    %226 = vmatprep.mubr.bf16.mxu0 0
    %227 = vmatmul.mubr.bf16.gmra.mrb[0].mxu0 %v116
    %v228 = vpop.f32.mrb[0].mxu0
    %v229 = vadd.f32 %v82, %v228
    %v230 = vpop.f32.mrb[0].mxu0
    %v231 = vpop.f32.mrb[0].mxu0
    %v232 = vadd.f32 %v82, %v231
    %v233 = vpop.f32.mrb[0].mxu0
    %234 = vmatprep.mubr.bf16.mxu0 0
    %235 = vmatmul.mubr.bf16.gmra.mrb[0].mxu0 %v119
    %v236 = vpop.f32.mrb[0].mxu0
    %v237 = vadd.f32 %v82, %v236
    %v238 = vpop.f32.mrb[0].mxu0
    %v239 = vpop.f32.mrb[0].mxu0
    %v240 = vadd.f32 %v82, %v239
    %v241 = vpop.f32.mrb[0].mxu0
    %242 = vmatprep.mubr.bf16.mxu0 0
    %243 = vmatmul.mubr.bf16.gmra.mrb[0].mxu0 %v122
    %v244 = vpop.f32.mrb[0].mxu0
    %v245 = vadd.f32 %v82, %v244
    %v246 = vpop.f32.mrb[0].mxu0
    %v247 = vpop.f32.mrb[0].mxu0
    %v248 = vadd.f32 %v82, %v247
    %v249 = vpop.f32.mrb[0].mxu0
    %250 = vmatprep.mubr.bf16.mxu0 0
    %251 = vmatmul.mubr.bf16.gmra.mrb[0].mxu0 %v125
    %v252 = vpop.f32.mrb[0].mxu0
    %v253 = vadd.f32 %v82, %v252
    %v254 = vpop.f32.mrb[0].mxu0
    %v255 = vpop.f32.mrb[0].mxu0
    %v256 = vadd.f32 %v82, %v255
    %v257 = vpop.f32.mrb[0].mxu0
    %258 = vmatprep.mubr.bf16.mxu0 0
    %259 = vmatmul.mubr.bf16.gmra.mrb[0].mxu0 %v128
    %v260 = vpop.f32.mrb[0].mxu0
    %v261 = vadd.f32 %v82, %v260
    %v262 = vpop.f32.mrb[0].mxu0
    %v263 = vpop.f32.mrb[0].mxu0
    %v264 = vpop.f32.mrb[0].mxu0
    %265 = vdwg.mxu0
    %v266 = vmax.f32 %v165, 0.0
    %v267 = vmax.f32 %v168, 0.0
    %v268 = vmax.f32 %v173, 0.0
    %v269 = vmax.f32 %v176, 0.0
    %v270 = vmax.f32 %v181, 0.0
    %v271 = vmax.f32 %v184, 0.0
    %v272 = vmax.f32 %v189, 0.0
    %v273 = vmax.f32 %v192, 0.0
    %v274 = vmax.f32 %v197, 0.0
    %v275 = vmax.f32 %v200, 0.0
    %v276 = vmax.f32 %v205, 0.0
    %v277 = vmax.f32 %v208, 0.0
    %v278 = vmax.f32 %v213, 0.0
    %v279 = vmax.f32 %v216, 0.0
    %v280 = vmax.f32 %v221, 0.0
    %v281 = vmax.f32 %v224, 0.0
    %v282 = vmax.f32 %v229, 0.0
    %v283 = vmax.f32 %v232, 0.0
    %v284 = vmax.f32 %v237, 0.0
    %v285 = vmax.f32 %v240, 0.0
    %v286 = vmax.f32 %v245, 0.0
    %v287 = vmax.f32 %v248, 0.0
    %v288 = vmax.f32 %v253, 0.0
    %v289 = vmax.f32 %v256, 0.0
    %v290 = vmax.f32 %v261, 0.0
    %v291 = vpack.c.bf16 %v267, %v266
    %v292 = vpack.c.bf16 %v269, %v268
    %v293 = vpack.c.bf16 %v271, %v270
    %v294 = vpack.c.bf16 %v273, %v272
    %v295 = vpack.c.bf16 %v275, %v274
    %v296 = vpack.c.bf16 %v277, %v276
    %v297 = vpack.c.bf16 %v279, %v278
    %v298 = vpack.c.bf16 %v281, %v280
    %v299 = vpack.c.bf16 %v283, %v282
    %v300 = vpack.c.bf16 %v285, %v284
    %v301 = vpack.c.bf16 %v287, %v286
    %v302 = vpack.c.bf16 %v289, %v288
    %v303 = vpack.c.bf16 %v290, %v290
    %v304 = vld [vmem:[%s6] sm:$0xf]
    %v305 = vld [vmem:[%s6 + $0x4] sm:$0xf]
    %v306 = vld [vmem:[%s6 + $0x8] sm:$0xf]
    %v307 = vld [vmem:[%s6 + $0xc] sm:$0xf]
    %v308 = vld [vmem:[%s6 + $0x10] sm:$0xf]
    %v309 = vld [vmem:[%s6 + $0x14] sm:$0xf]
    %v310 = vld [vmem:[%s6 + $0x18] sm:$0xf]
    %v311 = vld [vmem:[%s6 + $0x1c] sm:$0xf]
    %v312 = vld [vmem:[%s6 + $0x20] sm:$0xf]
    %v313 = vld [vmem:[%s6 + $0x24] sm:$0xf]
    %v314 = vld [vmem:[%s6 + $0x28] sm:$0xf]
    %v315 = vld [vmem:[%s6 + $0x2c] sm:$0xf]
    %v316 = vld [vmem:[%s6 + $0x30] sm:$0xf]
    %v317 = vld [vmem:[%s6 + $0x34] sm:$0xf]
    %v318 = vld [vmem:[%s6 + $0x38] sm:$0xf]
    %v319 = vld [vmem:[%s6 + $0x3c] sm:$0xf]
    %v320 = vld [vmem:[%s7] sm:$0x1]
    %v322 = vlaneseq
    %v323 = vshrl.u32 %v322, 7
    %v324 = vsub.s32 0, %v323
    %v325 = vrot.slane %v320, %v324
    %v343 = vunpack.c.l.b16 %v304
    %v344 = vunpack.c.l.b16 %v305
    %v345 = vunpack.c.l.b16 %v306
    %v346 = vunpack.c.l.b16 %v307
    %v347 = vunpack.c.l.b16 %v308
    %v348 = vunpack.c.l.b16 %v309
    %v349 = vunpack.c.l.b16 %v310
    %v350 = vunpack.c.l.b16 %v311
    %v351 = vunpack.c.l.b16 %v312
    %v352 = vunpack.c.l.b16 %v313
    %v353 = vunpack.c.l.b16 %v314
    %v354 = vunpack.c.l.b16 %v315
    %v355 = vunpack.c.l.b16 %v316
    %v356 = vunpack.c.l.b16 %v317
    %v357 = vunpack.c.l.b16 %v318
    %v358 = vunpack.c.l.b16 %v319
    %v359 = vpack.c.b16 %v344, %v343
    %v360 = vpack.c.b16 %v346, %v345
    %v361 = vpack.c.b16 %v348, %v347
    %v362 = vpack.c.b16 %v350, %v349
    %v363 = vpack.c.b16 %v352, %v351
    %v364 = vpack.c.b16 %v354, %v353
    %v365 = vpack.c.b16 %v356, %v355
    %v366 = vpack.c.b16 %v358, %v357
    %375 = vmatprep.subr.bf16.mxu0 0
    %376 = vmatpush1.bf16.msra.mxu0 %v359
    %377 = vmatprep.subr.bf16.mxu0 0
    %378 = vmatpush1.bf16.msra.mxu0 %v360
    %379 = vmatprep.subr.bf16.mxu0 0
    %380 = vmatpush1.bf16.msra.mxu0 %v361
    %381 = vmatprep.subr.bf16.mxu0 0
    %382 = vmatpush1.bf16.msra.mxu0 %v362
    %383 = vmatprep.subr.bf16.mxu0 0
    %384 = vmatpush1.bf16.msra.mxu0 %v363
    %385 = vmatprep.subr.bf16.mxu0 0
    %386 = vmatpush1.bf16.msra.mxu0 %v364
    %387 = vmatprep.subr.bf16.mxu0 0
    %388 = vmatpush1.bf16.msra.mxu0 %v365
    %389 = vmatprep.subr.bf16.mxu0 0
    %390 = vmatpush1.bf16.msra.mxu0 %v366
    %391 = vmatprep.subr.bf16.mxu0 0
    %392 = vmatpush1.bf16.msra.mxu0 0
    %393 = vmatprep.subr.bf16.mxu0 0
    %394 = vmatpush1.bf16.msra.mxu0 0
    %395 = vmatprep.subr.bf16.mxu0 0
    %396 = vmatpush1.bf16.msra.mxu0 0
    %397 = vmatprep.subr.bf16.mxu0 0
    %398 = vmatpush1.bf16.msra.mxu0 0
    %399 = vmatprep.subr.bf16.mxu0 0
    %400 = vmatpush1.bf16.msra.mxu0 0
    %401 = vmatprep.subr.bf16.mxu0 0
    %402 = vmatpush1.bf16.msra.mxu0 0
    %403 = vmatprep.subr.bf16.mxu0 0
    %404 = vmatpush1.bf16.msra.mxu0 0
    %405 = vmatprep.subr.bf16.mxu0 0
    %406 = vmatpush1.bf16.msra.mxu0 0
    %407 = vmatprep.mubr.bf16.mxu0 0
    %408 = vmatmul.mubr.bf16.gmra.mrb[0].mxu0 %v291
    %v409 = vpop.f32.mrb[0].mxu0
    %v410 = vadd.f32 %v325, %v409
    %v411 = vpop.f32.mrb[0].mxu0
    %v412 = vpop.f32.mrb[0].mxu0
    %v413 = vadd.f32 %v325, %v412
    %v414 = vpop.f32.mrb[0].mxu0
    %415 = vmatprep.mubr.bf16.mxu0 0
    %416 = vmatmul.mubr.bf16.gmra.mrb[0].mxu0 %v292
    %v417 = vpop.f32.mrb[0].mxu0
    %v418 = vadd.f32 %v325, %v417
    %v419 = vpop.f32.mrb[0].mxu0
    %v420 = vpop.f32.mrb[0].mxu0
    %v421 = vadd.f32 %v325, %v420
    %v422 = vpop.f32.mrb[0].mxu0
    %423 = vmatprep.mubr.bf16.mxu0 0
    %424 = vmatmul.mubr.bf16.gmra.mrb[0].mxu0 %v293
    %v425 = vpop.f32.mrb[0].mxu0
    %v426 = vadd.f32 %v325, %v425
    %v427 = vpop.f32.mrb[0].mxu0
    %v428 = vpop.f32.mrb[0].mxu0
    %v429 = vadd.f32 %v325, %v428
    %v430 = vpop.f32.mrb[0].mxu0
    %431 = vmatprep.mubr.bf16.mxu0 0
    %432 = vmatmul.mubr.bf16.gmra.mrb[0].mxu0 %v294
    %v433 = vpop.f32.mrb[0].mxu0
    %v434 = vadd.f32 %v325, %v433
    %v435 = vpop.f32.mrb[0].mxu0
    %v436 = vpop.f32.mrb[0].mxu0
    %v437 = vadd.f32 %v325, %v436
    %v438 = vpop.f32.mrb[0].mxu0
    %439 = vmatprep.mubr.bf16.mxu0 0
    %440 = vmatmul.mubr.bf16.gmra.mrb[0].mxu0 %v295
    %v441 = vpop.f32.mrb[0].mxu0
    %v442 = vadd.f32 %v325, %v441
    %v443 = vpop.f32.mrb[0].mxu0
    %v444 = vpop.f32.mrb[0].mxu0
    %v445 = vadd.f32 %v325, %v444
    %v446 = vpop.f32.mrb[0].mxu0
    %447 = vmatprep.mubr.bf16.mxu0 0
    %448 = vmatmul.mubr.bf16.gmra.mrb[0].mxu0 %v296
    %v449 = vpop.f32.mrb[0].mxu0
    %v450 = vadd.f32 %v325, %v449
    %v451 = vpop.f32.mrb[0].mxu0
    %v452 = vpop.f32.mrb[0].mxu0
    %v453 = vadd.f32 %v325, %v452
    %v454 = vpop.f32.mrb[0].mxu0
    %455 = vmatprep.mubr.bf16.mxu0 0
    %456 = vmatmul.mubr.bf16.gmra.mrb[0].mxu0 %v297
    %v457 = vpop.f32.mrb[0].mxu0
    %v458 = vadd.f32 %v325, %v457
    %v459 = vpop.f32.mrb[0].mxu0
    %v460 = vpop.f32.mrb[0].mxu0
    %v461 = vadd.f32 %v325, %v460
    %v462 = vpop.f32.mrb[0].mxu0
    %463 = vmatprep.mubr.bf16.mxu0 0
    %464 = vmatmul.mubr.bf16.gmra.mrb[0].mxu0 %v298
    %v465 = vpop.f32.mrb[0].mxu0
    %v466 = vadd.f32 %v325, %v465
    %v467 = vpop.f32.mrb[0].mxu0
    %v468 = vpop.f32.mrb[0].mxu0
    %v469 = vadd.f32 %v325, %v468
    %v470 = vpop.f32.mrb[0].mxu0
    %471 = vmatprep.mubr.bf16.mxu0 0
    %472 = vmatmul.mubr.bf16.gmra.mrb[0].mxu0 %v299
    %v473 = vpop.f32.mrb[0].mxu0
    %v474 = vadd.f32 %v325, %v473
    %v475 = vpop.f32.mrb[0].mxu0
    %v476 = vpop.f32.mrb[0].mxu0
    %v477 = vadd.f32 %v325, %v476
    %v478 = vpop.f32.mrb[0].mxu0
    %479 = vmatprep.mubr.bf16.mxu0 0
    %480 = vmatmul.mubr.bf16.gmra.mrb[0].mxu0 %v300
    %v481 = vpop.f32.mrb[0].mxu0
    %v482 = vadd.f32 %v325, %v481
    %v483 = vpop.f32.mrb[0].mxu0
    %v484 = vpop.f32.mrb[0].mxu0
    %v485 = vadd.f32 %v325, %v484
    %v486 = vpop.f32.mrb[0].mxu0
    %487 = vmatprep.mubr.bf16.mxu0 0
    %488 = vmatmul.mubr.bf16.gmra.mrb[0].mxu0 %v301
    %v489 = vpop.f32.mrb[0].mxu0
    %v490 = vadd.f32 %v325, %v489
    %v491 = vpop.f32.mrb[0].mxu0
    %v492 = vpop.f32.mrb[0].mxu0
    %v493 = vadd.f32 %v325, %v492
    %v494 = vpop.f32.mrb[0].mxu0
    %495 = vmatprep.mubr.bf16.mxu0 0
    %496 = vmatmul.mubr.bf16.gmra.mrb[0].mxu0 %v302
    %v497 = vpop.f32.mrb[0].mxu0
    %v498 = vadd.f32 %v325, %v497
    %v499 = vpop.f32.mrb[0].mxu0
    %v500 = vpop.f32.mrb[0].mxu0
    %v501 = vadd.f32 %v325, %v500
    %v502 = vpop.f32.mrb[0].mxu0
    %503 = vmatprep.mubr.bf16.mxu0 0
    %504 = vmatmul.mubr.bf16.gmra.mrb[0].mxu0 %v303
    %v505 = vpop.f32.mrb[0].mxu0
    %v506 = vadd.f32 %v325, %v505
    %v507 = vpop.f32.mrb[0].mxu0
    %v508 = vpop.f32.mrb[0].mxu0
    %v509 = vpop.f32.mrb[0].mxu0
    %510 = vdwg.mxu0
    %v511 = vmax.f32 %v410, 0.0
    %v512 = vmax.f32 %v413, 0.0
    %v513 = vmax.f32 %v418, 0.0
    %v514 = vmax.f32 %v421, 0.0
    %v515 = vmax.f32 %v426, 0.0
    %v516 = vmax.f32 %v429, 0.0
    %v517 = vmax.f32 %v434, 0.0
    %v518 = vmax.f32 %v437, 0.0
    %v519 = vmax.f32 %v442, 0.0
    %v520 = vmax.f32 %v445, 0.0
    %v521 = vmax.f32 %v450, 0.0
    %v522 = vmax.f32 %v453, 0.0
    %v523 = vmax.f32 %v458, 0.0
    %v524 = vmax.f32 %v461, 0.0
    %v525 = vmax.f32 %v466, 0.0
    %v526 = vmax.f32 %v469, 0.0
    %v527 = vmax.f32 %v474, 0.0
    %v528 = vmax.f32 %v477, 0.0
    %v529 = vmax.f32 %v482, 0.0
    %v530 = vmax.f32 %v485, 0.0
    %v531 = vmax.f32 %v490, 0.0
    %v532 = vmax.f32 %v493, 0.0
    %v533 = vmax.f32 %v498, 0.0
    %v534 = vmax.f32 %v501, 0.0
    %v535 = vmax.f32 %v506, 0.0
    %v536 = vpack.c.bf16 %v512, %v511
    %v537 = vpack.c.bf16 %v514, %v513
    %v538 = vpack.c.bf16 %v516, %v515
    %v539 = vpack.c.bf16 %v518, %v517
    %v540 = vpack.c.bf16 %v520, %v519
    %v541 = vpack.c.bf16 %v522, %v521
    %v542 = vpack.c.bf16 %v524, %v523
    %v543 = vpack.c.bf16 %v526, %v525
    %v544 = vpack.c.bf16 %v528, %v527
    %v545 = vpack.c.bf16 %v530, %v529
    %v546 = vpack.c.bf16 %v532, %v531
    %v547 = vpack.c.bf16 %v534, %v533
    %v548 = vpack.c.bf16 %v535, %v535
    %v549 = vld [vmem:[%s8] sm:$0xf]
    %v550 = vld [vmem:[%s8 + $0x4] sm:$0xf]
    %v551 = vld [vmem:[%s8 + $0x8] sm:$0xf]
    %v552 = vld [vmem:[%s8 + $0xc] sm:$0xf]
    %v553 = vld [vmem:[%s8 + $0x10] sm:$0xf]
    %v554 = vld [vmem:[%s8 + $0x14] sm:$0xf]
    %v555 = vld [vmem:[%s8 + $0x18] sm:$0xf]
    %v556 = vld [vmem:[%s8 + $0x1c] sm:$0xf]
    %v557 = vld [vmem:[%s8 + $0x20] sm:$0xf]
    %v558 = vld [vmem:[%s8 + $0x24] sm:$0xf]
    %v559 = vld [vmem:[%s8 + $0x28] sm:$0xf]
    %v560 = vld [vmem:[%s8 + $0x2c] sm:$0xf]
    %v561 = vld [vmem:[%s8 + $0x30] sm:$0xf]
    %v562 = vld [vmem:[%s8 + $0x34] sm:$0xf]
    %v563 = vld [vmem:[%s8 + $0x38] sm:$0xf]
    %v564 = vld [vmem:[%s8 + $0x3c] sm:$0xf]
    %v565 = vld [vmem:[%s9] sm:$0x1]
    %v567 = vlaneseq
    %v568 = vshrl.u32 %v567, 7
    %v569 = vsub.s32 0, %v568
    %v570 = vrot.slane %v565, %v569
    %v588 = vunpack.c.l.b16 %v549
    %v589 = vunpack.c.l.b16 %v550
    %v590 = vunpack.c.l.b16 %v551
    %v591 = vunpack.c.l.b16 %v552
    %v592 = vunpack.c.l.b16 %v553
    %v593 = vunpack.c.l.b16 %v554
    %v594 = vunpack.c.l.b16 %v555
    %v595 = vunpack.c.l.b16 %v556
    %v596 = vunpack.c.l.b16 %v557
    %v597 = vunpack.c.l.b16 %v558
    %v598 = vunpack.c.l.b16 %v559
    %v599 = vunpack.c.l.b16 %v560
    %v600 = vunpack.c.l.b16 %v561
    %v601 = vunpack.c.l.b16 %v562
    %v602 = vunpack.c.l.b16 %v563
    %v603 = vunpack.c.l.b16 %v564
    %v604 = vpack.c.b16 %v589, %v588
    %v605 = vpack.c.b16 %v591, %v590
    %v606 = vpack.c.b16 %v593, %v592
    %v607 = vpack.c.b16 %v595, %v594
    %v608 = vpack.c.b16 %v597, %v596
    %v609 = vpack.c.b16 %v599, %v598
    %v610 = vpack.c.b16 %v601, %v600
    %v611 = vpack.c.b16 %v603, %v602
    %620 = vmatprep.subr.bf16.mxu0 0
    %621 = vmatpush1.bf16.msra.mxu0 %v604
    %622 = vmatprep.subr.bf16.mxu0 0
    %623 = vmatpush1.bf16.msra.mxu0 %v605
    %624 = vmatprep.subr.bf16.mxu0 0
    %625 = vmatpush1.bf16.msra.mxu0 %v606
    %626 = vmatprep.subr.bf16.mxu0 0
    %627 = vmatpush1.bf16.msra.mxu0 %v607
    %628 = vmatprep.subr.bf16.mxu0 0
    %629 = vmatpush1.bf16.msra.mxu0 %v608
    %630 = vmatprep.subr.bf16.mxu0 0
    %631 = vmatpush1.bf16.msra.mxu0 %v609
    %632 = vmatprep.subr.bf16.mxu0 0
    %633 = vmatpush1.bf16.msra.mxu0 %v610
    %634 = vmatprep.subr.bf16.mxu0 0
    %635 = vmatpush1.bf16.msra.mxu0 %v611
    %636 = vmatprep.subr.bf16.mxu0 0
    %637 = vmatpush1.bf16.msra.mxu0 0
    %638 = vmatprep.subr.bf16.mxu0 0
    %639 = vmatpush1.bf16.msra.mxu0 0
    %640 = vmatprep.subr.bf16.mxu0 0
    %641 = vmatpush1.bf16.msra.mxu0 0
    %642 = vmatprep.subr.bf16.mxu0 0
    %643 = vmatpush1.bf16.msra.mxu0 0
    %644 = vmatprep.subr.bf16.mxu0 0
    %645 = vmatpush1.bf16.msra.mxu0 0
    %646 = vmatprep.subr.bf16.mxu0 0
    %647 = vmatpush1.bf16.msra.mxu0 0
    %648 = vmatprep.subr.bf16.mxu0 0
    %649 = vmatpush1.bf16.msra.mxu0 0
    %650 = vmatprep.subr.bf16.mxu0 0
    %651 = vmatpush1.bf16.msra.mxu0 0
    %652 = vmatprep.mubr.bf16.mxu0 0
    %653 = vmatmul.mubr.bf16.gmra.mrb[0].mxu0 %v536
    %v654 = vpop.f32.mrb[0].mxu0
    %v655 = vadd.f32 %v570, %v654
    %v656 = vpop.f32.mrb[0].mxu0
    %v657 = vpop.f32.mrb[0].mxu0
    %v658 = vadd.f32 %v570, %v657
    %v659 = vpop.f32.mrb[0].mxu0
    %660 = vmatprep.mubr.bf16.mxu0 0
    %661 = vmatmul.mubr.bf16.gmra.mrb[0].mxu0 %v537
    %v662 = vpop.f32.mrb[0].mxu0
    %v663 = vadd.f32 %v570, %v662
    %v664 = vpop.f32.mrb[0].mxu0
    %v665 = vpop.f32.mrb[0].mxu0
    %v666 = vadd.f32 %v570, %v665
    %v667 = vpop.f32.mrb[0].mxu0
    %668 = vmatprep.mubr.bf16.mxu0 0
    %669 = vmatmul.mubr.bf16.gmra.mrb[0].mxu0 %v538
    %v670 = vpop.f32.mrb[0].mxu0
    %v671 = vadd.f32 %v570, %v670
    %v672 = vpop.f32.mrb[0].mxu0
    %v673 = vpop.f32.mrb[0].mxu0
    %v674 = vadd.f32 %v570, %v673
    %v675 = vpop.f32.mrb[0].mxu0
    %676 = vmatprep.mubr.bf16.mxu0 0
    %677 = vmatmul.mubr.bf16.gmra.mrb[0].mxu0 %v539
    %v678 = vpop.f32.mrb[0].mxu0
    %v679 = vadd.f32 %v570, %v678
    %v680 = vpop.f32.mrb[0].mxu0
    %v681 = vpop.f32.mrb[0].mxu0
    %v682 = vadd.f32 %v570, %v681
    %v683 = vpop.f32.mrb[0].mxu0
    %684 = vmatprep.mubr.bf16.mxu0 0
    %685 = vmatmul.mubr.bf16.gmra.mrb[0].mxu0 %v540
    %v686 = vpop.f32.mrb[0].mxu0
    %v687 = vadd.f32 %v570, %v686
    %v688 = vpop.f32.mrb[0].mxu0
    %v689 = vpop.f32.mrb[0].mxu0
    %v690 = vadd.f32 %v570, %v689
    %v691 = vpop.f32.mrb[0].mxu0
    %692 = vmatprep.mubr.bf16.mxu0 0
    %693 = vmatmul.mubr.bf16.gmra.mrb[0].mxu0 %v541
    %v694 = vpop.f32.mrb[0].mxu0
    %v695 = vadd.f32 %v570, %v694
    %v696 = vpop.f32.mrb[0].mxu0
    %v697 = vpop.f32.mrb[0].mxu0
    %v698 = vadd.f32 %v570, %v697
    %v699 = vpop.f32.mrb[0].mxu0
    %700 = vmatprep.mubr.bf16.mxu0 0
    %701 = vmatmul.mubr.bf16.gmra.mrb[0].mxu0 %v542
    %v702 = vpop.f32.mrb[0].mxu0
    %v703 = vadd.f32 %v570, %v702
    %v704 = vpop.f32.mrb[0].mxu0
    %v705 = vpop.f32.mrb[0].mxu0
    %v706 = vadd.f32 %v570, %v705
    %v707 = vpop.f32.mrb[0].mxu0
    %708 = vmatprep.mubr.bf16.mxu0 0
    %709 = vmatmul.mubr.bf16.gmra.mrb[0].mxu0 %v543
    %v710 = vpop.f32.mrb[0].mxu0
    %v711 = vadd.f32 %v570, %v710
    %v712 = vpop.f32.mrb[0].mxu0
    %v713 = vpop.f32.mrb[0].mxu0
    %v714 = vadd.f32 %v570, %v713
    %v715 = vpop.f32.mrb[0].mxu0
    %716 = vmatprep.mubr.bf16.mxu0 0
    %717 = vmatmul.mubr.bf16.gmra.mrb[0].mxu0 %v544
    %v718 = vpop.f32.mrb[0].mxu0
    %v719 = vadd.f32 %v570, %v718
    %v720 = vpop.f32.mrb[0].mxu0
    %v721 = vpop.f32.mrb[0].mxu0
    %v722 = vadd.f32 %v570, %v721
    %v723 = vpop.f32.mrb[0].mxu0
    %724 = vmatprep.mubr.bf16.mxu0 0
    %725 = vmatmul.mubr.bf16.gmra.mrb[0].mxu0 %v545
    %v726 = vpop.f32.mrb[0].mxu0
    %v727 = vadd.f32 %v570, %v726
    %v728 = vpop.f32.mrb[0].mxu0
    %v729 = vpop.f32.mrb[0].mxu0
    %v730 = vadd.f32 %v570, %v729
    %v731 = vpop.f32.mrb[0].mxu0
    %732 = vmatprep.mubr.bf16.mxu0 0
    %733 = vmatmul.mubr.bf16.gmra.mrb[0].mxu0 %v546
    %v734 = vpop.f32.mrb[0].mxu0
    %v735 = vadd.f32 %v570, %v734
    %v736 = vpop.f32.mrb[0].mxu0
    %v737 = vpop.f32.mrb[0].mxu0
    %v738 = vadd.f32 %v570, %v737
    %v739 = vpop.f32.mrb[0].mxu0
    %740 = vmatprep.mubr.bf16.mxu0 0
    %741 = vmatmul.mubr.bf16.gmra.mrb[0].mxu0 %v547
    %v742 = vpop.f32.mrb[0].mxu0
    %v743 = vadd.f32 %v570, %v742
    %v744 = vpop.f32.mrb[0].mxu0
    %v745 = vpop.f32.mrb[0].mxu0
    %v746 = vadd.f32 %v570, %v745
    %v747 = vpop.f32.mrb[0].mxu0
    %748 = vmatprep.mubr.bf16.mxu0 0
    %749 = vmatmul.mubr.bf16.gmra.mrb[0].mxu0 %v548
    %v750 = vpop.f32.mrb[0].mxu0
    %v751 = vadd.f32 %v570, %v750
    %v752 = vpop.f32.mrb[0].mxu0
    %v753 = vpop.f32.mrb[0].mxu0
    %v754 = vpop.f32.mrb[0].mxu0
    %755 = vdwg.mxu0
    %v756 = vlaneseq
    %v757 = vand.u32 %v756, 127
    %vm758 = vcmp.lt.s32.totalorder %v757, 4
    %v759 = vtanh.pop %v655
    %v760 = vtanh.pop %v658
    %v761 = vtanh.pop %v663
    %v762 = vtanh.pop %v666
    %v763 = vtanh.pop %v671
    %v764 = vtanh.pop %v674
    %v765 = vtanh.pop %v679
    %v766 = vtanh.pop %v682
    %v767 = vtanh.pop %v687
    %v768 = vtanh.pop %v690
    %v769 = vtanh.pop %v695
    %v770 = vtanh.pop %v698
    %v771 = vtanh.pop %v703
    %v772 = vtanh.pop %v706
    %v773 = vtanh.pop %v711
    %v774 = vtanh.pop %v714
    %v775 = vtanh.pop %v719
    %v776 = vtanh.pop %v722
    %v777 = vtanh.pop %v727
    %v778 = vtanh.pop %v730
    %v779 = vtanh.pop %v735
    %v780 = vtanh.pop %v738
    %v781 = vtanh.pop %v743
    %v782 = vtanh.pop %v746
    %v783 = vtanh.pop %v751
    %v784 = vsel %vm758, %v759, %v655
    %v785 = vsel %vm758, %v760, %v658
    %v786 = vsel %vm758, %v761, %v663
    %v787 = vsel %vm758, %v762, %v666
    %v788 = vsel %vm758, %v763, %v671
    %v789 = vsel %vm758, %v764, %v674
    %v790 = vsel %vm758, %v765, %v679
    %v791 = vsel %vm758, %v766, %v682
    %v792 = vsel %vm758, %v767, %v687
    %v793 = vsel %vm758, %v768, %v690
    %v794 = vsel %vm758, %v769, %v695
    %v795 = vsel %vm758, %v770, %v698
    %v796 = vsel %vm758, %v771, %v703
    %v797 = vsel %vm758, %v772, %v706
    %v798 = vsel %vm758, %v773, %v711
    %v799 = vsel %vm758, %v774, %v714
    %v800 = vsel %vm758, %v775, %v719
    %v801 = vsel %vm758, %v776, %v722
    %v802 = vsel %vm758, %v777, %v727
    %v803 = vsel %vm758, %v778, %v730
    %v804 = vsel %vm758, %v779, %v735
    %v805 = vsel %vm758, %v780, %v738
    %v806 = vsel %vm758, %v781, %v743
    %v807 = vsel %vm758, %v782, %v746
    %v808 = vsel %vm758, %v783, %v751
    %v809 = vld [vmem:[%s1] sm:$0xff]
    %v810 = vld [vmem:[%s1 + $0x8] sm:$0xff]
    %v811 = vld [vmem:[%s1 + $0x10] sm:$0xff]
    %v812 = vld [vmem:[%s1 + $0x18] sm:$0xff]
    %v813 = vld [vmem:[%s1 + $0x20] sm:$0xff]
    %v814 = vld [vmem:[%s1 + $0x28] sm:$0xff]
    %v815 = vld [vmem:[%s1 + $0x30] sm:$0xff]
    %v816 = vld [vmem:[%s1 + $0x38] sm:$0xff]
    %v817 = vld [vmem:[%s1 + $0x40] sm:$0xff]
    %v818 = vld [vmem:[%s1 + $0x48] sm:$0xff]
    %v819 = vld [vmem:[%s1 + $0x50] sm:$0xff]
    %v820 = vld [vmem:[%s1 + $0x58] sm:$0xff]
    %v821 = vld [vmem:[%s1 + $0x60] sm:$0xff]
    %v822 = vld [vmem:[%s1 + $0x68] sm:$0xff]
    %v823 = vld [vmem:[%s1 + $0x70] sm:$0xff]
    %v824 = vld [vmem:[%s1 + $0x78] sm:$0xff]
    %v825 = vld [vmem:[%s1 + $0x80] sm:$0xff]
    %v826 = vld [vmem:[%s1 + $0x88] sm:$0xff]
    %v827 = vld [vmem:[%s1 + $0x90] sm:$0xff]
    %v828 = vld [vmem:[%s1 + $0x98] sm:$0xff]
    %v829 = vld [vmem:[%s1 + $0xa0] sm:$0xff]
    %v830 = vld [vmem:[%s1 + $0xa8] sm:$0xff]
    %v831 = vld [vmem:[%s1 + $0xb0] sm:$0xff]
    %v832 = vld [vmem:[%s1 + $0xb8] sm:$0xff]
    %v833 = vld [vmem:[%s1 + $0xc0] sm:$0xff]
    %v834 = vld [vmem:[%s2] sm:$0xff]
    %vm835 = vcmask 64512
    %v837 = vsel %vm835, %v809, 0
    %v840 = vsel %vm835, %v810, 0
    %v843 = vsel %vm835, %v811, 0
    %v846 = vsel %vm835, %v812, 0
    %v849 = vsel %vm835, %v813, 0
    %v852 = vsel %vm835, %v814, 0
    %v855 = vsel %vm835, %v815, 0
    %v858 = vsel %vm835, %v816, 0
    %v861 = vsel %vm835, %v817, 0
    %v864 = vsel %vm835, %v818, 0
    %v867 = vsel %vm835, %v819, 0
    %v870 = vsel %vm835, %v820, 0
    %v873 = vsel %vm835, %v821, 0
    %v876 = vsel %vm835, %v822, 0
    %v879 = vsel %vm835, %v823, 0
    %v882 = vsel %vm835, %v824, 0
    %v885 = vsel %vm835, %v825, 0
    %v888 = vsel %vm835, %v826, 0
    %v891 = vsel %vm835, %v827, 0
    %v894 = vsel %vm835, %v828, 0
    %v897 = vsel %vm835, %v829, 0
    %v900 = vsel %vm835, %v830, 0
    %v903 = vsel %vm835, %v831, 0
    %v906 = vsel %vm835, %v832, 0
    %v909 = vsel %vm835, %v833, 0
    %911 = vmatprep.subr.mxu0 0.0
    %v912 = vand.u32 %v834, 4294901760
    %913 = vmatpush1.msra.mxu0 %v912
    %914 = vmatprep.subr.mxu0 0.0
    %915 = vmatpush1.msra.mxu0 0.0
    %916 = vmatprep.subr.mxu0 0.0
    %917 = vmatpush1.msra.mxu0 0.0
    %918 = vmatprep.subr.mxu0 0.0
    %919 = vmatpush1.msra.mxu0 0.0
    %920 = vmatprep.subr.mxu0 0.0
    %921 = vmatpush1.msra.mxu0 0.0
    %922 = vmatprep.subr.mxu0 0.0
    %923 = vmatpush1.msra.mxu0 0.0
    %924 = vmatprep.subr.mxu0 0.0
    %925 = vmatpush1.msra.mxu0 0.0
    %926 = vmatprep.subr.mxu0 0.0
    %927 = vmatpush1.msra.mxu0 0.0
    %928 = vmatprep.subr.mxu0 0.0
    %929 = vmatpush1.msra.mxu0 0.0
    %930 = vmatprep.subr.mxu0 0.0
    %931 = vmatpush1.msra.mxu0 0.0
    %932 = vmatprep.subr.mxu0 0.0
    %933 = vmatpush1.msra.mxu0 0.0
    %934 = vmatprep.subr.mxu0 0.0
    %935 = vmatpush1.msra.mxu0 0.0
    %936 = vmatprep.subr.mxu0 0.0
    %937 = vmatpush1.msra.mxu0 0.0
    %938 = vmatprep.subr.mxu0 0.0
    %939 = vmatpush1.msra.mxu0 0.0
    %940 = vmatprep.subr.mxu0 0.0
    %941 = vmatpush1.msra.mxu0 0.0
    %942 = vmatprep.subr.mxu0 0.0
    %943 = vmatpush1.msra.mxu0 0.0
    %944 = vmatprep.subr.mxu0 0.0
    %945 = vmatpush1.msra.mxu0 0.0
    %946 = vmatprep.subr.mxu0 0.0
    %947 = vmatpush1.msra.mxu0 0.0
    %948 = vmatprep.subr.mxu0 0.0
    %949 = vmatpush1.msra.mxu0 0.0
    %950 = vmatprep.subr.mxu0 0.0
    %951 = vmatpush1.msra.mxu0 0.0
    %952 = vmatprep.subr.mxu0 0.0
    %953 = vmatpush1.msra.mxu0 0.0
    %954 = vmatprep.subr.mxu0 0.0
    %955 = vmatpush1.msra.mxu0 0.0
    %956 = vmatprep.subr.mxu0 0.0
    %957 = vmatpush1.msra.mxu0 0.0
    %958 = vmatprep.subr.mxu0 0.0
    %959 = vmatpush1.msra.mxu0 0.0
    %960 = vmatprep.subr.mxu0 0.0
    %961 = vmatpush1.msra.mxu0 0.0
    %962 = vmatprep.subr.mxu0 0.0
    %963 = vmatpush1.msra.mxu0 0.0
    %964 = vmatprep.subr.mxu0 0.0
    %965 = vmatpush1.msra.mxu0 0.0
    %966 = vmatprep.subr.mxu0 0.0
    %967 = vmatpush1.msra.mxu0 0.0
    %968 = vmatprep.subr.mxu0 0.0
    %969 = vmatpush1.msra.mxu0 0.0
    %970 = vmatprep.subr.mxu0 0.0
    %971 = vmatpush1.msra.mxu0 0.0
    %972 = vmatprep.subr.mxu0 0.0
    %973 = vmatpush1.msra.mxu0 0.0
    %974 = vmatprep.subr.mxu0 0.0
    %975 = vmatpush1.msra.mxu0 0.0
    %976 = vmatprep.mubr.f32.mxu0 0.0
    %v977 = vand.u32 %v837, 4294901760
    %v978 = vsub.f32 %v837, %v977
    %v979 = vand.u32 %v978, 4294901760
    %v980 = vsub.f32 %v978, %v979
    %v981 = vand.u32 %v980, 4294901760
    %982 = vmatmul.mubr.f32.gmra.mrb[0].mxu0 %v981
    %v983 = vpop.f32.mrb[0].mxu0
    %v984 = vadd.f32 0.0, %v983
    %v985 = vpop.f32.mrb[0].mxu0
    %986 = vmatprep.mubr.f32.mxu0 0.0
    %v987 = vand.u32 %v840, 4294901760
    %v988 = vsub.f32 %v840, %v987
    %v989 = vand.u32 %v988, 4294901760
    %v990 = vsub.f32 %v988, %v989
    %v991 = vand.u32 %v990, 4294901760
    %992 = vmatmul.mubr.f32.gmra.mrb[0].mxu0 %v991
    %v993 = vpop.f32.mrb[0].mxu0
    %v994 = vadd.f32 0.0, %v993
    %v995 = vpop.f32.mrb[0].mxu0
    %996 = vmatprep.mubr.f32.mxu0 0.0
    %v997 = vand.u32 %v843, 4294901760
    %v998 = vsub.f32 %v843, %v997
    %v999 = vand.u32 %v998, 4294901760
    %v1000 = vsub.f32 %v998, %v999
    %v1001 = vand.u32 %v1000, 4294901760
    %1002 = vmatmul.mubr.f32.gmra.mrb[0].mxu0 %v1001
    %v1003 = vpop.f32.mrb[0].mxu0
    %v1004 = vadd.f32 0.0, %v1003
    %v1005 = vpop.f32.mrb[0].mxu0
    %1006 = vmatprep.mubr.f32.mxu0 0.0
    %v1007 = vand.u32 %v846, 4294901760
    %v1008 = vsub.f32 %v846, %v1007
    %v1009 = vand.u32 %v1008, 4294901760
    %v1010 = vsub.f32 %v1008, %v1009
    %v1011 = vand.u32 %v1010, 4294901760
    %1012 = vmatmul.mubr.f32.gmra.mrb[0].mxu0 %v1011
    %v1013 = vpop.f32.mrb[0].mxu0
    %v1014 = vadd.f32 0.0, %v1013
    %v1015 = vpop.f32.mrb[0].mxu0
    %1016 = vmatprep.mubr.f32.mxu0 0.0
    %v1017 = vand.u32 %v849, 4294901760
    %v1018 = vsub.f32 %v849, %v1017
    %v1019 = vand.u32 %v1018, 4294901760
    %v1020 = vsub.f32 %v1018, %v1019
    %v1021 = vand.u32 %v1020, 4294901760
    %1022 = vmatmul.mubr.f32.gmra.mrb[0].mxu0 %v1021
    %v1023 = vpop.f32.mrb[0].mxu0
    %v1024 = vadd.f32 0.0, %v1023
    %v1025 = vpop.f32.mrb[0].mxu0
    %1026 = vmatprep.mubr.f32.mxu0 0.0
    %v1027 = vand.u32 %v852, 4294901760
    %v1028 = vsub.f32 %v852, %v1027
    %v1029 = vand.u32 %v1028, 4294901760
    %v1030 = vsub.f32 %v1028, %v1029
    %v1031 = vand.u32 %v1030, 4294901760
    %1032 = vmatmul.mubr.f32.gmra.mrb[0].mxu0 %v1031
    %v1033 = vpop.f32.mrb[0].mxu0
    %v1034 = vadd.f32 0.0, %v1033
    %v1035 = vpop.f32.mrb[0].mxu0
    %1036 = vmatprep.mubr.f32.mxu0 0.0
    %v1037 = vand.u32 %v855, 4294901760
    %v1038 = vsub.f32 %v855, %v1037
    %v1039 = vand.u32 %v1038, 4294901760
    %v1040 = vsub.f32 %v1038, %v1039
    %v1041 = vand.u32 %v1040, 4294901760
    %1042 = vmatmul.mubr.f32.gmra.mrb[0].mxu0 %v1041
    %v1043 = vpop.f32.mrb[0].mxu0
    %v1044 = vadd.f32 0.0, %v1043
    %v1045 = vpop.f32.mrb[0].mxu0
    %1046 = vmatprep.mubr.f32.mxu0 0.0
    %v1047 = vand.u32 %v858, 4294901760
    %v1048 = vsub.f32 %v858, %v1047
    %v1049 = vand.u32 %v1048, 4294901760
    %v1050 = vsub.f32 %v1048, %v1049
    %v1051 = vand.u32 %v1050, 4294901760
    %1052 = vmatmul.mubr.f32.gmra.mrb[0].mxu0 %v1051
    %v1053 = vpop.f32.mrb[0].mxu0
    %v1054 = vadd.f32 0.0, %v1053
    %v1055 = vpop.f32.mrb[0].mxu0
    %1056 = vmatprep.mubr.f32.mxu0 0.0
    %v1057 = vand.u32 %v861, 4294901760
    %v1058 = vsub.f32 %v861, %v1057
    %v1059 = vand.u32 %v1058, 4294901760
    %v1060 = vsub.f32 %v1058, %v1059
    %v1061 = vand.u32 %v1060, 4294901760
    %1062 = vmatmul.mubr.f32.gmra.mrb[0].mxu0 %v1061
    %v1063 = vpop.f32.mrb[0].mxu0
    %v1064 = vadd.f32 0.0, %v1063
    %v1065 = vpop.f32.mrb[0].mxu0
    %1066 = vmatprep.mubr.f32.mxu0 0.0
    %v1067 = vand.u32 %v864, 4294901760
    %v1068 = vsub.f32 %v864, %v1067
    %v1069 = vand.u32 %v1068, 4294901760
    %v1070 = vsub.f32 %v1068, %v1069
    %v1071 = vand.u32 %v1070, 4294901760
    %1072 = vmatmul.mubr.f32.gmra.mrb[0].mxu0 %v1071
    %v1073 = vpop.f32.mrb[0].mxu0
    %v1074 = vadd.f32 0.0, %v1073
    %v1075 = vpop.f32.mrb[0].mxu0
    %1076 = vmatprep.mubr.f32.mxu0 0.0
    %v1077 = vand.u32 %v867, 4294901760
    %v1078 = vsub.f32 %v867, %v1077
    %v1079 = vand.u32 %v1078, 4294901760
    %v1080 = vsub.f32 %v1078, %v1079
    %v1081 = vand.u32 %v1080, 4294901760
    %1082 = vmatmul.mubr.f32.gmra.mrb[0].mxu0 %v1081
    %v1083 = vpop.f32.mrb[0].mxu0
    %v1084 = vadd.f32 0.0, %v1083
    %v1085 = vpop.f32.mrb[0].mxu0
    %1086 = vmatprep.mubr.f32.mxu0 0.0
    %v1087 = vand.u32 %v870, 4294901760
    %v1088 = vsub.f32 %v870, %v1087
    %v1089 = vand.u32 %v1088, 4294901760
    %v1090 = vsub.f32 %v1088, %v1089
    %v1091 = vand.u32 %v1090, 4294901760
    %1092 = vmatmul.mubr.f32.gmra.mrb[0].mxu0 %v1091
    %v1093 = vpop.f32.mrb[0].mxu0
    %v1094 = vadd.f32 0.0, %v1093
    %v1095 = vpop.f32.mrb[0].mxu0
    %1096 = vmatprep.mubr.f32.mxu0 0.0
    %v1097 = vand.u32 %v873, 4294901760
    %v1098 = vsub.f32 %v873, %v1097
    %v1099 = vand.u32 %v1098, 4294901760
    %v1100 = vsub.f32 %v1098, %v1099
    %v1101 = vand.u32 %v1100, 4294901760
    %1102 = vmatmul.mubr.f32.gmra.mrb[0].mxu0 %v1101
    %v1103 = vpop.f32.mrb[0].mxu0
    %v1104 = vadd.f32 0.0, %v1103
    %v1105 = vpop.f32.mrb[0].mxu0
    %1106 = vmatprep.mubr.f32.mxu0 0.0
    %v1107 = vand.u32 %v876, 4294901760
    %v1108 = vsub.f32 %v876, %v1107
    %v1109 = vand.u32 %v1108, 4294901760
    %v1110 = vsub.f32 %v1108, %v1109
    %v1111 = vand.u32 %v1110, 4294901760
    %1112 = vmatmul.mubr.f32.gmra.mrb[0].mxu0 %v1111
    %v1113 = vpop.f32.mrb[0].mxu0
    %v1114 = vadd.f32 0.0, %v1113
    %v1115 = vpop.f32.mrb[0].mxu0
    %1116 = vmatprep.mubr.f32.mxu0 0.0
    %v1117 = vand.u32 %v879, 4294901760
    %v1118 = vsub.f32 %v879, %v1117
    %v1119 = vand.u32 %v1118, 4294901760
    %v1120 = vsub.f32 %v1118, %v1119
    %v1121 = vand.u32 %v1120, 4294901760
    %1122 = vmatmul.mubr.f32.gmra.mrb[0].mxu0 %v1121
    %v1123 = vpop.f32.mrb[0].mxu0
    %v1124 = vadd.f32 0.0, %v1123
    %v1125 = vpop.f32.mrb[0].mxu0
    %1126 = vmatprep.mubr.f32.mxu0 0.0
    %v1127 = vand.u32 %v882, 4294901760
    %v1128 = vsub.f32 %v882, %v1127
    %v1129 = vand.u32 %v1128, 4294901760
    %v1130 = vsub.f32 %v1128, %v1129
    %v1131 = vand.u32 %v1130, 4294901760
    %1132 = vmatmul.mubr.f32.gmra.mrb[0].mxu0 %v1131
    %v1133 = vpop.f32.mrb[0].mxu0
    %v1134 = vadd.f32 0.0, %v1133
    %v1135 = vpop.f32.mrb[0].mxu0
    %1136 = vmatprep.mubr.f32.mxu0 0.0
    %v1137 = vand.u32 %v885, 4294901760
    %v1138 = vsub.f32 %v885, %v1137
    %v1139 = vand.u32 %v1138, 4294901760
    %v1140 = vsub.f32 %v1138, %v1139
    %v1141 = vand.u32 %v1140, 4294901760
    %1142 = vmatmul.mubr.f32.gmra.mrb[0].mxu0 %v1141
    %v1143 = vpop.f32.mrb[0].mxu0
    %v1144 = vadd.f32 0.0, %v1143
    %v1145 = vpop.f32.mrb[0].mxu0
    %1146 = vmatprep.mubr.f32.mxu0 0.0
    %v1147 = vand.u32 %v888, 4294901760
    %v1148 = vsub.f32 %v888, %v1147
    %v1149 = vand.u32 %v1148, 4294901760
    %v1150 = vsub.f32 %v1148, %v1149
    %v1151 = vand.u32 %v1150, 4294901760
    %1152 = vmatmul.mubr.f32.gmra.mrb[0].mxu0 %v1151
    %v1153 = vpop.f32.mrb[0].mxu0
    %v1154 = vadd.f32 0.0, %v1153
    %v1155 = vpop.f32.mrb[0].mxu0
    %1156 = vmatprep.mubr.f32.mxu0 0.0
    %v1157 = vand.u32 %v891, 4294901760
    %v1158 = vsub.f32 %v891, %v1157
    %v1159 = vand.u32 %v1158, 4294901760
    %v1160 = vsub.f32 %v1158, %v1159
    %v1161 = vand.u32 %v1160, 4294901760
    %1162 = vmatmul.mubr.f32.gmra.mrb[0].mxu0 %v1161
    %v1163 = vpop.f32.mrb[0].mxu0
    %v1164 = vadd.f32 0.0, %v1163
    %v1165 = vpop.f32.mrb[0].mxu0
    %1166 = vmatprep.mubr.f32.mxu0 0.0
    %v1167 = vand.u32 %v894, 4294901760
    %v1168 = vsub.f32 %v894, %v1167
    %v1169 = vand.u32 %v1168, 4294901760
    %v1170 = vsub.f32 %v1168, %v1169
    %v1171 = vand.u32 %v1170, 4294901760
    %1172 = vmatmul.mubr.f32.gmra.mrb[0].mxu0 %v1171
    %v1173 = vpop.f32.mrb[0].mxu0
    %v1174 = vadd.f32 0.0, %v1173
    %v1175 = vpop.f32.mrb[0].mxu0
    %1176 = vmatprep.mubr.f32.mxu0 0.0
    %v1177 = vand.u32 %v897, 4294901760
    %v1178 = vsub.f32 %v897, %v1177
    %v1179 = vand.u32 %v1178, 4294901760
    %v1180 = vsub.f32 %v1178, %v1179
    %v1181 = vand.u32 %v1180, 4294901760
    %1182 = vmatmul.mubr.f32.gmra.mrb[0].mxu0 %v1181
    %v1183 = vpop.f32.mrb[0].mxu0
    %v1184 = vadd.f32 0.0, %v1183
    %v1185 = vpop.f32.mrb[0].mxu0
    %1186 = vmatprep.mubr.f32.mxu0 0.0
    %v1187 = vand.u32 %v900, 4294901760
    %v1188 = vsub.f32 %v900, %v1187
    %v1189 = vand.u32 %v1188, 4294901760
    %v1190 = vsub.f32 %v1188, %v1189
    %v1191 = vand.u32 %v1190, 4294901760
    %1192 = vmatmul.mubr.f32.gmra.mrb[0].mxu0 %v1191
    %v1193 = vpop.f32.mrb[0].mxu0
    %v1194 = vadd.f32 0.0, %v1193
    %v1195 = vpop.f32.mrb[0].mxu0
    %1196 = vmatprep.mubr.f32.mxu0 0.0
    %v1197 = vand.u32 %v903, 4294901760
    %v1198 = vsub.f32 %v903, %v1197
    %v1199 = vand.u32 %v1198, 4294901760
    %v1200 = vsub.f32 %v1198, %v1199
    %v1201 = vand.u32 %v1200, 4294901760
    %1202 = vmatmul.mubr.f32.gmra.mrb[0].mxu0 %v1201
    %v1203 = vpop.f32.mrb[0].mxu0
    %v1204 = vadd.f32 0.0, %v1203
    %v1205 = vpop.f32.mrb[0].mxu0
    %1206 = vmatprep.mubr.f32.mxu0 0.0
    %v1207 = vand.u32 %v906, 4294901760
    %v1208 = vsub.f32 %v906, %v1207
    %v1209 = vand.u32 %v1208, 4294901760
    %v1210 = vsub.f32 %v1208, %v1209
    %v1211 = vand.u32 %v1210, 4294901760
    %1212 = vmatmul.mubr.f32.gmra.mrb[0].mxu0 %v1211
    %v1213 = vpop.f32.mrb[0].mxu0
    %v1214 = vadd.f32 0.0, %v1213
    %v1215 = vpop.f32.mrb[0].mxu0
    %1216 = vmatprep.mubr.f32.mxu0 0.0
    %v1217 = vand.u32 %v909, 4294901760
    %v1218 = vsub.f32 %v909, %v1217
    %v1219 = vand.u32 %v1218, 4294901760
    %v1220 = vsub.f32 %v1218, %v1219
    %v1221 = vand.u32 %v1220, 4294901760
    %1222 = vmatmul.mubr.f32.gmra.mrb[0].mxu0 %v1221
    %v1223 = vpop.f32.mrb[0].mxu0
    %v1224 = vadd.f32 0.0, %v1223
    %v1225 = vpop.f32.mrb[0].mxu0
    %1226 = vdwg.mxu0
    %1227 = vmatprep.subr.mxu0 0.0
    %v1228 = vand.u32 %v834, 4294901760
    %v1229 = vsub.f32 %v834, %v1228
    %v1230 = vand.u32 %v1229, 4294901760
    %v1231 = vsub.f32 %v1229, %v1230
    %v1232 = vand.u32 %v1231, 4294901760
    %1233 = vmatpush1.msra.mxu0 %v1232
    %1234 = vmatprep.subr.mxu0 0.0
    %1235 = vmatpush1.msra.mxu0 0.0
    %1236 = vmatprep.subr.mxu0 0.0
    %1237 = vmatpush1.msra.mxu0 0.0
    %1238 = vmatprep.subr.mxu0 0.0
    %1239 = vmatpush1.msra.mxu0 0.0
    %1240 = vmatprep.subr.mxu0 0.0
    %1241 = vmatpush1.msra.mxu0 0.0
    %1242 = vmatprep.subr.mxu0 0.0
    %1243 = vmatpush1.msra.mxu0 0.0
    %1244 = vmatprep.subr.mxu0 0.0
    %1245 = vmatpush1.msra.mxu0 0.0
    %1246 = vmatprep.subr.mxu0 0.0
    %1247 = vmatpush1.msra.mxu0 0.0
    %1248 = vmatprep.subr.mxu0 0.0
    %1249 = vmatpush1.msra.mxu0 0.0
    %1250 = vmatprep.subr.mxu0 0.0
    %1251 = vmatpush1.msra.mxu0 0.0
    %1252 = vmatprep.subr.mxu0 0.0
    %1253 = vmatpush1.msra.mxu0 0.0
    %1254 = vmatprep.subr.mxu0 0.0
    %1255 = vmatpush1.msra.mxu0 0.0
    %1256 = vmatprep.subr.mxu0 0.0
    %1257 = vmatpush1.msra.mxu0 0.0
    %1258 = vmatprep.subr.mxu0 0.0
    %1259 = vmatpush1.msra.mxu0 0.0
    %1260 = vmatprep.subr.mxu0 0.0
    %1261 = vmatpush1.msra.mxu0 0.0
    %1262 = vmatprep.subr.mxu0 0.0
    %1263 = vmatpush1.msra.mxu0 0.0
    %1264 = vmatprep.subr.mxu0 0.0
    %1265 = vmatpush1.msra.mxu0 0.0
    %1266 = vmatprep.subr.mxu0 0.0
    %1267 = vmatpush1.msra.mxu0 0.0
    %1268 = vmatprep.subr.mxu0 0.0
    %1269 = vmatpush1.msra.mxu0 0.0
    %1270 = vmatprep.subr.mxu0 0.0
    %1271 = vmatpush1.msra.mxu0 0.0
    %1272 = vmatprep.subr.mxu0 0.0
    %1273 = vmatpush1.msra.mxu0 0.0
    %1274 = vmatprep.subr.mxu0 0.0
    %1275 = vmatpush1.msra.mxu0 0.0
    %1276 = vmatprep.subr.mxu0 0.0
    %1277 = vmatpush1.msra.mxu0 0.0
    %1278 = vmatprep.subr.mxu0 0.0
    %1279 = vmatpush1.msra.mxu0 0.0
    %1280 = vmatprep.subr.mxu0 0.0
    %1281 = vmatpush1.msra.mxu0 0.0
    %1282 = vmatprep.subr.mxu0 0.0
    %1283 = vmatpush1.msra.mxu0 0.0
    %1284 = vmatprep.subr.mxu0 0.0
    %1285 = vmatpush1.msra.mxu0 0.0
    %1286 = vmatprep.subr.mxu0 0.0
    %1287 = vmatpush1.msra.mxu0 0.0
    %1288 = vmatprep.subr.mxu0 0.0
    %1289 = vmatpush1.msra.mxu0 0.0
    %1290 = vmatprep.subr.mxu0 0.0
    %1291 = vmatpush1.msra.mxu0 0.0
    %1292 = vmatprep.subr.mxu0 0.0
    %1293 = vmatpush1.msra.mxu0 0.0
    %1294 = vmatprep.subr.mxu0 0.0
    %1295 = vmatpush1.msra.mxu0 0.0
    %1296 = vmatprep.mubr.f32.mxu0 0.0
    %v1297 = vand.u32 %v837, 4294901760
    %1298 = vmatmul.mubr.f32.gmra.mrb[0].mxu0 %v1297
    %v1299 = vpop.f32.mrb[0].mxu0
    %v1300 = vadd.f32 %v984, %v1299
    %v1301 = vpop.f32.mrb[0].mxu0
    %1302 = vmatprep.mubr.f32.mxu0 0.0
    %v1303 = vand.u32 %v840, 4294901760
    %1304 = vmatmul.mubr.f32.gmra.mrb[0].mxu0 %v1303
    %v1305 = vpop.f32.mrb[0].mxu0
    %v1306 = vadd.f32 %v994, %v1305
    %v1307 = vpop.f32.mrb[0].mxu0
    %1308 = vmatprep.mubr.f32.mxu0 0.0
    %v1309 = vand.u32 %v843, 4294901760
    %1310 = vmatmul.mubr.f32.gmra.mrb[0].mxu0 %v1309
    %v1311 = vpop.f32.mrb[0].mxu0
    %v1312 = vadd.f32 %v1004, %v1311
    %v1313 = vpop.f32.mrb[0].mxu0
    %1314 = vmatprep.mubr.f32.mxu0 0.0
    %v1315 = vand.u32 %v846, 4294901760
    %1316 = vmatmul.mubr.f32.gmra.mrb[0].mxu0 %v1315
    %v1317 = vpop.f32.mrb[0].mxu0
    %v1318 = vadd.f32 %v1014, %v1317
    %v1319 = vpop.f32.mrb[0].mxu0
    %1320 = vmatprep.mubr.f32.mxu0 0.0
    %v1321 = vand.u32 %v849, 4294901760
    %1322 = vmatmul.mubr.f32.gmra.mrb[0].mxu0 %v1321
    %v1323 = vpop.f32.mrb[0].mxu0
    %v1324 = vadd.f32 %v1024, %v1323
    %v1325 = vpop.f32.mrb[0].mxu0
    %1326 = vmatprep.mubr.f32.mxu0 0.0
    %v1327 = vand.u32 %v852, 4294901760
    %1328 = vmatmul.mubr.f32.gmra.mrb[0].mxu0 %v1327
    %v1329 = vpop.f32.mrb[0].mxu0
    %v1330 = vadd.f32 %v1034, %v1329
    %v1331 = vpop.f32.mrb[0].mxu0
    %1332 = vmatprep.mubr.f32.mxu0 0.0
    %v1333 = vand.u32 %v855, 4294901760
    %1334 = vmatmul.mubr.f32.gmra.mrb[0].mxu0 %v1333
    %v1335 = vpop.f32.mrb[0].mxu0
    %v1336 = vadd.f32 %v1044, %v1335
    %v1337 = vpop.f32.mrb[0].mxu0
    %1338 = vmatprep.mubr.f32.mxu0 0.0
    %v1339 = vand.u32 %v858, 4294901760
    %1340 = vmatmul.mubr.f32.gmra.mrb[0].mxu0 %v1339
    %v1341 = vpop.f32.mrb[0].mxu0
    %v1342 = vadd.f32 %v1054, %v1341
    %v1343 = vpop.f32.mrb[0].mxu0
    %1344 = vmatprep.mubr.f32.mxu0 0.0
    %v1345 = vand.u32 %v861, 4294901760
    %1346 = vmatmul.mubr.f32.gmra.mrb[0].mxu0 %v1345
    %v1347 = vpop.f32.mrb[0].mxu0
    %v1348 = vadd.f32 %v1064, %v1347
    %v1349 = vpop.f32.mrb[0].mxu0
    %1350 = vmatprep.mubr.f32.mxu0 0.0
    %v1351 = vand.u32 %v864, 4294901760
    %1352 = vmatmul.mubr.f32.gmra.mrb[0].mxu0 %v1351
    %v1353 = vpop.f32.mrb[0].mxu0
    %v1354 = vadd.f32 %v1074, %v1353
    %v1355 = vpop.f32.mrb[0].mxu0
    %1356 = vmatprep.mubr.f32.mxu0 0.0
    %v1357 = vand.u32 %v867, 4294901760
    %1358 = vmatmul.mubr.f32.gmra.mrb[0].mxu0 %v1357
    %v1359 = vpop.f32.mrb[0].mxu0
    %v1360 = vadd.f32 %v1084, %v1359
    %v1361 = vpop.f32.mrb[0].mxu0
    %1362 = vmatprep.mubr.f32.mxu0 0.0
    %v1363 = vand.u32 %v870, 4294901760
    %1364 = vmatmul.mubr.f32.gmra.mrb[0].mxu0 %v1363
    %v1365 = vpop.f32.mrb[0].mxu0
    %v1366 = vadd.f32 %v1094, %v1365
    %v1367 = vpop.f32.mrb[0].mxu0
    %1368 = vmatprep.mubr.f32.mxu0 0.0
    %v1369 = vand.u32 %v873, 4294901760
    %1370 = vmatmul.mubr.f32.gmra.mrb[0].mxu0 %v1369
    %v1371 = vpop.f32.mrb[0].mxu0
    %v1372 = vadd.f32 %v1104, %v1371
    %v1373 = vpop.f32.mrb[0].mxu0
    %1374 = vmatprep.mubr.f32.mxu0 0.0
    %v1375 = vand.u32 %v876, 4294901760
    %1376 = vmatmul.mubr.f32.gmra.mrb[0].mxu0 %v1375
    %v1377 = vpop.f32.mrb[0].mxu0
    %v1378 = vadd.f32 %v1114, %v1377
    %v1379 = vpop.f32.mrb[0].mxu0
    %1380 = vmatprep.mubr.f32.mxu0 0.0
    %v1381 = vand.u32 %v879, 4294901760
    %1382 = vmatmul.mubr.f32.gmra.mrb[0].mxu0 %v1381
    %v1383 = vpop.f32.mrb[0].mxu0
    %v1384 = vadd.f32 %v1124, %v1383
    %v1385 = vpop.f32.mrb[0].mxu0
    %1386 = vmatprep.mubr.f32.mxu0 0.0
    %v1387 = vand.u32 %v882, 4294901760
    %1388 = vmatmul.mubr.f32.gmra.mrb[0].mxu0 %v1387
    %v1389 = vpop.f32.mrb[0].mxu0
    %v1390 = vadd.f32 %v1134, %v1389
    %v1391 = vpop.f32.mrb[0].mxu0
    %1392 = vmatprep.mubr.f32.mxu0 0.0
    %v1393 = vand.u32 %v885, 4294901760
    %1394 = vmatmul.mubr.f32.gmra.mrb[0].mxu0 %v1393
    %v1395 = vpop.f32.mrb[0].mxu0
    %v1396 = vadd.f32 %v1144, %v1395
    %v1397 = vpop.f32.mrb[0].mxu0
    %1398 = vmatprep.mubr.f32.mxu0 0.0
    %v1399 = vand.u32 %v888, 4294901760
    %1400 = vmatmul.mubr.f32.gmra.mrb[0].mxu0 %v1399
    %v1401 = vpop.f32.mrb[0].mxu0
    %v1402 = vadd.f32 %v1154, %v1401
    %v1403 = vpop.f32.mrb[0].mxu0
    %1404 = vmatprep.mubr.f32.mxu0 0.0
    %v1405 = vand.u32 %v891, 4294901760
    %1406 = vmatmul.mubr.f32.gmra.mrb[0].mxu0 %v1405
    %v1407 = vpop.f32.mrb[0].mxu0
    %v1408 = vadd.f32 %v1164, %v1407
    %v1409 = vpop.f32.mrb[0].mxu0
    %1410 = vmatprep.mubr.f32.mxu0 0.0
    %v1411 = vand.u32 %v894, 4294901760
    %1412 = vmatmul.mubr.f32.gmra.mrb[0].mxu0 %v1411
    %v1413 = vpop.f32.mrb[0].mxu0
    %v1414 = vadd.f32 %v1174, %v1413
    %v1415 = vpop.f32.mrb[0].mxu0
    %1416 = vmatprep.mubr.f32.mxu0 0.0
    %v1417 = vand.u32 %v897, 4294901760
    %1418 = vmatmul.mubr.f32.gmra.mrb[0].mxu0 %v1417
    %v1419 = vpop.f32.mrb[0].mxu0
    %v1420 = vadd.f32 %v1184, %v1419
    %v1421 = vpop.f32.mrb[0].mxu0
    %1422 = vmatprep.mubr.f32.mxu0 0.0
    %v1423 = vand.u32 %v900, 4294901760
    %1424 = vmatmul.mubr.f32.gmra.mrb[0].mxu0 %v1423
    %v1425 = vpop.f32.mrb[0].mxu0
    %v1426 = vadd.f32 %v1194, %v1425
    %v1427 = vpop.f32.mrb[0].mxu0
    %1428 = vmatprep.mubr.f32.mxu0 0.0
    %v1429 = vand.u32 %v903, 4294901760
    %1430 = vmatmul.mubr.f32.gmra.mrb[0].mxu0 %v1429
    %v1431 = vpop.f32.mrb[0].mxu0
    %v1432 = vadd.f32 %v1204, %v1431
    %v1433 = vpop.f32.mrb[0].mxu0
    %1434 = vmatprep.mubr.f32.mxu0 0.0
    %v1435 = vand.u32 %v906, 4294901760
    %1436 = vmatmul.mubr.f32.gmra.mrb[0].mxu0 %v1435
    %v1437 = vpop.f32.mrb[0].mxu0
    %v1438 = vadd.f32 %v1214, %v1437
    %v1439 = vpop.f32.mrb[0].mxu0
    %1440 = vmatprep.mubr.f32.mxu0 0.0
    %v1441 = vand.u32 %v909, 4294901760
    %1442 = vmatmul.mubr.f32.gmra.mrb[0].mxu0 %v1441
    %v1443 = vpop.f32.mrb[0].mxu0
    %v1444 = vadd.f32 %v1224, %v1443
    %v1445 = vpop.f32.mrb[0].mxu0
    %1446 = vdwg.mxu0
    %1447 = vmatprep.subr.mxu0 0.0
    %v1448 = vand.u32 %v834, 4294901760
    %v1449 = vsub.f32 %v834, %v1448
    %1450 = vmatpush1.msra.mxu0 %v1449
    %1451 = vmatprep.subr.mxu0 0.0
    %1452 = vmatpush1.msra.mxu0 0.0
    %1453 = vmatprep.subr.mxu0 0.0
    %1454 = vmatpush1.msra.mxu0 0.0
    %1455 = vmatprep.subr.mxu0 0.0
    %1456 = vmatpush1.msra.mxu0 0.0
    %1457 = vmatprep.subr.mxu0 0.0
    %1458 = vmatpush1.msra.mxu0 0.0
    %1459 = vmatprep.subr.mxu0 0.0
    %1460 = vmatpush1.msra.mxu0 0.0
    %1461 = vmatprep.subr.mxu0 0.0
    %1462 = vmatpush1.msra.mxu0 0.0
    %1463 = vmatprep.subr.mxu0 0.0
    %1464 = vmatpush1.msra.mxu0 0.0
    %1465 = vmatprep.subr.mxu0 0.0
    %1466 = vmatpush1.msra.mxu0 0.0
    %1467 = vmatprep.subr.mxu0 0.0
    %1468 = vmatpush1.msra.mxu0 0.0
    %1469 = vmatprep.subr.mxu0 0.0
    %1470 = vmatpush1.msra.mxu0 0.0
    %1471 = vmatprep.subr.mxu0 0.0
    %1472 = vmatpush1.msra.mxu0 0.0
    %1473 = vmatprep.subr.mxu0 0.0
    %1474 = vmatpush1.msra.mxu0 0.0
    %1475 = vmatprep.subr.mxu0 0.0
    %1476 = vmatpush1.msra.mxu0 0.0
    %1477 = vmatprep.subr.mxu0 0.0
    %1478 = vmatpush1.msra.mxu0 0.0
    %1479 = vmatprep.subr.mxu0 0.0
    %1480 = vmatpush1.msra.mxu0 0.0
    %1481 = vmatprep.subr.mxu0 0.0
    %1482 = vmatpush1.msra.mxu0 0.0
    %1483 = vmatprep.subr.mxu0 0.0
    %1484 = vmatpush1.msra.mxu0 0.0
    %1485 = vmatprep.subr.mxu0 0.0
    %1486 = vmatpush1.msra.mxu0 0.0
    %1487 = vmatprep.subr.mxu0 0.0
    %1488 = vmatpush1.msra.mxu0 0.0
    %1489 = vmatprep.subr.mxu0 0.0
    %1490 = vmatpush1.msra.mxu0 0.0
    %1491 = vmatprep.subr.mxu0 0.0
    %1492 = vmatpush1.msra.mxu0 0.0
    %1493 = vmatprep.subr.mxu0 0.0
    %1494 = vmatpush1.msra.mxu0 0.0
    %1495 = vmatprep.subr.mxu0 0.0
    %1496 = vmatpush1.msra.mxu0 0.0
    %1497 = vmatprep.subr.mxu0 0.0
    %1498 = vmatpush1.msra.mxu0 0.0
    %1499 = vmatprep.subr.mxu0 0.0
    %1500 = vmatpush1.msra.mxu0 0.0
    %1501 = vmatprep.subr.mxu0 0.0
    %1502 = vmatpush1.msra.mxu0 0.0
    %1503 = vmatprep.subr.mxu0 0.0
    %1504 = vmatpush1.msra.mxu0 0.0
    %1505 = vmatprep.subr.mxu0 0.0
    %1506 = vmatpush1.msra.mxu0 0.0
    %1507 = vmatprep.subr.mxu0 0.0
    %1508 = vmatpush1.msra.mxu0 0.0
    %1509 = vmatprep.subr.mxu0 0.0
    %1510 = vmatpush1.msra.mxu0 0.0
    %1511 = vmatprep.subr.mxu0 0.0
    %1512 = vmatpush1.msra.mxu0 0.0
    %1513 = vmatprep.mubr.f32.mxu0 0.0
    %v1514 = vand.u32 %v837, 4294901760
    %v1515 = vsub.f32 %v837, %v1514
    %1516 = vmatmul.mubr.f32.gmra.mrb[0].mxu0 %v1515
    %v1517 = vpop.f32.mrb[0].mxu0
    %v1518 = vadd.f32 %v1300, %v1517
    %v1519 = vpop.f32.mrb[0].mxu0
    %1520 = vmatprep.mubr.f32.mxu0 0.0
    %v1521 = vand.u32 %v840, 4294901760
    %v1522 = vsub.f32 %v840, %v1521
    %1523 = vmatmul.mubr.f32.gmra.mrb[0].mxu0 %v1522
    %v1524 = vpop.f32.mrb[0].mxu0
    %v1525 = vadd.f32 %v1306, %v1524
    %v1526 = vpop.f32.mrb[0].mxu0
    %1527 = vmatprep.mubr.f32.mxu0 0.0
    %v1528 = vand.u32 %v843, 4294901760
    %v1529 = vsub.f32 %v843, %v1528
    %1530 = vmatmul.mubr.f32.gmra.mrb[0].mxu0 %v1529
    %v1531 = vpop.f32.mrb[0].mxu0
    %v1532 = vadd.f32 %v1312, %v1531
    %v1533 = vpop.f32.mrb[0].mxu0
    %1534 = vmatprep.mubr.f32.mxu0 0.0
    %v1535 = vand.u32 %v846, 4294901760
    %v1536 = vsub.f32 %v846, %v1535
    %1537 = vmatmul.mubr.f32.gmra.mrb[0].mxu0 %v1536
    %v1538 = vpop.f32.mrb[0].mxu0
    %v1539 = vadd.f32 %v1318, %v1538
    %v1540 = vpop.f32.mrb[0].mxu0
    %1541 = vmatprep.mubr.f32.mxu0 0.0
    %v1542 = vand.u32 %v849, 4294901760
    %v1543 = vsub.f32 %v849, %v1542
    %1544 = vmatmul.mubr.f32.gmra.mrb[0].mxu0 %v1543
    %v1545 = vpop.f32.mrb[0].mxu0
    %v1546 = vadd.f32 %v1324, %v1545
    %v1547 = vpop.f32.mrb[0].mxu0
    %1548 = vmatprep.mubr.f32.mxu0 0.0
    %v1549 = vand.u32 %v852, 4294901760
    %v1550 = vsub.f32 %v852, %v1549
    %1551 = vmatmul.mubr.f32.gmra.mrb[0].mxu0 %v1550
    %v1552 = vpop.f32.mrb[0].mxu0
    %v1553 = vadd.f32 %v1330, %v1552
    %v1554 = vpop.f32.mrb[0].mxu0
    %1555 = vmatprep.mubr.f32.mxu0 0.0
    %v1556 = vand.u32 %v855, 4294901760
    %v1557 = vsub.f32 %v855, %v1556
    %1558 = vmatmul.mubr.f32.gmra.mrb[0].mxu0 %v1557
    %v1559 = vpop.f32.mrb[0].mxu0
    %v1560 = vadd.f32 %v1336, %v1559
    %v1561 = vpop.f32.mrb[0].mxu0
    %1562 = vmatprep.mubr.f32.mxu0 0.0
    %v1563 = vand.u32 %v858, 4294901760
    %v1564 = vsub.f32 %v858, %v1563
    %1565 = vmatmul.mubr.f32.gmra.mrb[0].mxu0 %v1564
    %v1566 = vpop.f32.mrb[0].mxu0
    %v1567 = vadd.f32 %v1342, %v1566
    %v1568 = vpop.f32.mrb[0].mxu0
    %1569 = vmatprep.mubr.f32.mxu0 0.0
    %v1570 = vand.u32 %v861, 4294901760
    %v1571 = vsub.f32 %v861, %v1570
    %1572 = vmatmul.mubr.f32.gmra.mrb[0].mxu0 %v1571
    %v1573 = vpop.f32.mrb[0].mxu0
    %v1574 = vadd.f32 %v1348, %v1573
    %v1575 = vpop.f32.mrb[0].mxu0
    %1576 = vmatprep.mubr.f32.mxu0 0.0
    %v1577 = vand.u32 %v864, 4294901760
    %v1578 = vsub.f32 %v864, %v1577
    %1579 = vmatmul.mubr.f32.gmra.mrb[0].mxu0 %v1578
    %v1580 = vpop.f32.mrb[0].mxu0
    %v1581 = vadd.f32 %v1354, %v1580
    %v1582 = vpop.f32.mrb[0].mxu0
    %1583 = vmatprep.mubr.f32.mxu0 0.0
    %v1584 = vand.u32 %v867, 4294901760
    %v1585 = vsub.f32 %v867, %v1584
    %1586 = vmatmul.mubr.f32.gmra.mrb[0].mxu0 %v1585
    %v1587 = vpop.f32.mrb[0].mxu0
    %v1588 = vadd.f32 %v1360, %v1587
    %v1589 = vpop.f32.mrb[0].mxu0
    %1590 = vmatprep.mubr.f32.mxu0 0.0
    %v1591 = vand.u32 %v870, 4294901760
    %v1592 = vsub.f32 %v870, %v1591
    %1593 = vmatmul.mubr.f32.gmra.mrb[0].mxu0 %v1592
    %v1594 = vpop.f32.mrb[0].mxu0
    %v1595 = vadd.f32 %v1366, %v1594
    %v1596 = vpop.f32.mrb[0].mxu0
    %1597 = vmatprep.mubr.f32.mxu0 0.0
    %v1598 = vand.u32 %v873, 4294901760
    %v1599 = vsub.f32 %v873, %v1598
    %1600 = vmatmul.mubr.f32.gmra.mrb[0].mxu0 %v1599
    %v1601 = vpop.f32.mrb[0].mxu0
    %v1602 = vadd.f32 %v1372, %v1601
    %v1603 = vpop.f32.mrb[0].mxu0
    %1604 = vmatprep.mubr.f32.mxu0 0.0
    %v1605 = vand.u32 %v876, 4294901760
    %v1606 = vsub.f32 %v876, %v1605
    %1607 = vmatmul.mubr.f32.gmra.mrb[0].mxu0 %v1606
    %v1608 = vpop.f32.mrb[0].mxu0
    %v1609 = vadd.f32 %v1378, %v1608
    %v1610 = vpop.f32.mrb[0].mxu0
    %1611 = vmatprep.mubr.f32.mxu0 0.0
    %v1612 = vand.u32 %v879, 4294901760
    %v1613 = vsub.f32 %v879, %v1612
    %1614 = vmatmul.mubr.f32.gmra.mrb[0].mxu0 %v1613
    %v1615 = vpop.f32.mrb[0].mxu0
    %v1616 = vadd.f32 %v1384, %v1615
    %v1617 = vpop.f32.mrb[0].mxu0
    %1618 = vmatprep.mubr.f32.mxu0 0.0
    %v1619 = vand.u32 %v882, 4294901760
    %v1620 = vsub.f32 %v882, %v1619
    %1621 = vmatmul.mubr.f32.gmra.mrb[0].mxu0 %v1620
    %v1622 = vpop.f32.mrb[0].mxu0
    %v1623 = vadd.f32 %v1390, %v1622
    %v1624 = vpop.f32.mrb[0].mxu0
    %1625 = vmatprep.mubr.f32.mxu0 0.0
    %v1626 = vand.u32 %v885, 4294901760
    %v1627 = vsub.f32 %v885, %v1626
    %1628 = vmatmul.mubr.f32.gmra.mrb[0].mxu0 %v1627
    %v1629 = vpop.f32.mrb[0].mxu0
    %v1630 = vadd.f32 %v1396, %v1629
    %v1631 = vpop.f32.mrb[0].mxu0
    %1632 = vmatprep.mubr.f32.mxu0 0.0
    %v1633 = vand.u32 %v888, 4294901760
    %v1634 = vsub.f32 %v888, %v1633
    %1635 = vmatmul.mubr.f32.gmra.mrb[0].mxu0 %v1634
    %v1636 = vpop.f32.mrb[0].mxu0
    %v1637 = vadd.f32 %v1402, %v1636
    %v1638 = vpop.f32.mrb[0].mxu0
    %1639 = vmatprep.mubr.f32.mxu0 0.0
    %v1640 = vand.u32 %v891, 4294901760
    %v1641 = vsub.f32 %v891, %v1640
    %1642 = vmatmul.mubr.f32.gmra.mrb[0].mxu0 %v1641
    %v1643 = vpop.f32.mrb[0].mxu0
    %v1644 = vadd.f32 %v1408, %v1643
    %v1645 = vpop.f32.mrb[0].mxu0
    %1646 = vmatprep.mubr.f32.mxu0 0.0
    %v1647 = vand.u32 %v894, 4294901760
    %v1648 = vsub.f32 %v894, %v1647
    %1649 = vmatmul.mubr.f32.gmra.mrb[0].mxu0 %v1648
    %v1650 = vpop.f32.mrb[0].mxu0
    %v1651 = vadd.f32 %v1414, %v1650
    %v1652 = vpop.f32.mrb[0].mxu0
    %1653 = vmatprep.mubr.f32.mxu0 0.0
    %v1654 = vand.u32 %v897, 4294901760
    %v1655 = vsub.f32 %v897, %v1654
    %1656 = vmatmul.mubr.f32.gmra.mrb[0].mxu0 %v1655
    %v1657 = vpop.f32.mrb[0].mxu0
    %v1658 = vadd.f32 %v1420, %v1657
    %v1659 = vpop.f32.mrb[0].mxu0
    %1660 = vmatprep.mubr.f32.mxu0 0.0
    %v1661 = vand.u32 %v900, 4294901760
    %v1662 = vsub.f32 %v900, %v1661
    %1663 = vmatmul.mubr.f32.gmra.mrb[0].mxu0 %v1662
    %v1664 = vpop.f32.mrb[0].mxu0
    %v1665 = vadd.f32 %v1426, %v1664
    %v1666 = vpop.f32.mrb[0].mxu0
    %1667 = vmatprep.mubr.f32.mxu0 0.0
    %v1668 = vand.u32 %v903, 4294901760
    %v1669 = vsub.f32 %v903, %v1668
    %1670 = vmatmul.mubr.f32.gmra.mrb[0].mxu0 %v1669
    %v1671 = vpop.f32.mrb[0].mxu0
    %v1672 = vadd.f32 %v1432, %v1671
    %v1673 = vpop.f32.mrb[0].mxu0
    %1674 = vmatprep.mubr.f32.mxu0 0.0
    %v1675 = vand.u32 %v906, 4294901760
    %v1676 = vsub.f32 %v906, %v1675
    %1677 = vmatmul.mubr.f32.gmra.mrb[0].mxu0 %v1676
    %v1678 = vpop.f32.mrb[0].mxu0
    %v1679 = vadd.f32 %v1438, %v1678
    %v1680 = vpop.f32.mrb[0].mxu0
    %1681 = vmatprep.mubr.f32.mxu0 0.0
    %v1682 = vand.u32 %v909, 4294901760
    %v1683 = vsub.f32 %v909, %v1682
    %1684 = vmatmul.mubr.f32.gmra.mrb[0].mxu0 %v1683
    %v1685 = vpop.f32.mrb[0].mxu0
    %v1686 = vadd.f32 %v1444, %v1685
    %v1687 = vpop.f32.mrb[0].mxu0
    %1688 = vdwg.mxu0
    %1689 = vmatprep.subr.mxu0 0.0
    %v1690 = vand.u32 %v834, 4294901760
    %1691 = vmatpush1.msra.mxu0 %v1690
    %1692 = vmatprep.subr.mxu0 0.0
    %1693 = vmatpush1.msra.mxu0 0.0
    %1694 = vmatprep.subr.mxu0 0.0
    %1695 = vmatpush1.msra.mxu0 0.0
    %1696 = vmatprep.subr.mxu0 0.0
    %1697 = vmatpush1.msra.mxu0 0.0
    %1698 = vmatprep.subr.mxu0 0.0
    %1699 = vmatpush1.msra.mxu0 0.0
    %1700 = vmatprep.subr.mxu0 0.0
    %1701 = vmatpush1.msra.mxu0 0.0
    %1702 = vmatprep.subr.mxu0 0.0
    %1703 = vmatpush1.msra.mxu0 0.0
    %1704 = vmatprep.subr.mxu0 0.0
    %1705 = vmatpush1.msra.mxu0 0.0
    %1706 = vmatprep.subr.mxu0 0.0
    %1707 = vmatpush1.msra.mxu0 0.0
    %1708 = vmatprep.subr.mxu0 0.0
    %1709 = vmatpush1.msra.mxu0 0.0
    %1710 = vmatprep.subr.mxu0 0.0
    %1711 = vmatpush1.msra.mxu0 0.0
    %1712 = vmatprep.subr.mxu0 0.0
    %1713 = vmatpush1.msra.mxu0 0.0
    %1714 = vmatprep.subr.mxu0 0.0
    %1715 = vmatpush1.msra.mxu0 0.0
    %1716 = vmatprep.subr.mxu0 0.0
    %1717 = vmatpush1.msra.mxu0 0.0
    %1718 = vmatprep.subr.mxu0 0.0
    %1719 = vmatpush1.msra.mxu0 0.0
    %1720 = vmatprep.subr.mxu0 0.0
    %1721 = vmatpush1.msra.mxu0 0.0
    %1722 = vmatprep.subr.mxu0 0.0
    %1723 = vmatpush1.msra.mxu0 0.0
    %1724 = vmatprep.subr.mxu0 0.0
    %1725 = vmatpush1.msra.mxu0 0.0
    %1726 = vmatprep.subr.mxu0 0.0
    %1727 = vmatpush1.msra.mxu0 0.0
    %1728 = vmatprep.subr.mxu0 0.0
    %1729 = vmatpush1.msra.mxu0 0.0
    %1730 = vmatprep.subr.mxu0 0.0
    %1731 = vmatpush1.msra.mxu0 0.0
    %1732 = vmatprep.subr.mxu0 0.0
    %1733 = vmatpush1.msra.mxu0 0.0
    %1734 = vmatprep.subr.mxu0 0.0
    %1735 = vmatpush1.msra.mxu0 0.0
    %1736 = vmatprep.subr.mxu0 0.0
    %1737 = vmatpush1.msra.mxu0 0.0
    %1738 = vmatprep.subr.mxu0 0.0
    %1739 = vmatpush1.msra.mxu0 0.0
    %1740 = vmatprep.subr.mxu0 0.0
    %1741 = vmatpush1.msra.mxu0 0.0
    %1742 = vmatprep.subr.mxu0 0.0
    %1743 = vmatpush1.msra.mxu0 0.0
    %1744 = vmatprep.subr.mxu0 0.0
    %1745 = vmatpush1.msra.mxu0 0.0
    %1746 = vmatprep.subr.mxu0 0.0
    %1747 = vmatpush1.msra.mxu0 0.0
    %1748 = vmatprep.subr.mxu0 0.0
    %1749 = vmatpush1.msra.mxu0 0.0
    %1750 = vmatprep.subr.mxu0 0.0
    %1751 = vmatpush1.msra.mxu0 0.0
    %1752 = vmatprep.subr.mxu0 0.0
    %1753 = vmatpush1.msra.mxu0 0.0
    %1754 = vmatprep.mubr.f32.mxu0 0.0
    %v1755 = vand.u32 %v837, 4294901760
    %v1756 = vsub.f32 %v837, %v1755
    %v1757 = vand.u32 %v1756, 4294901760
    %1758 = vmatmul.mubr.f32.gmra.mrb[0].mxu0 %v1757
    %v1759 = vpop.f32.mrb[0].mxu0
    %v1760 = vadd.f32 %v1518, %v1759
    %v1761 = vpop.f32.mrb[0].mxu0
    %1762 = vmatprep.mubr.f32.mxu0 0.0
    %v1763 = vand.u32 %v840, 4294901760
    %v1764 = vsub.f32 %v840, %v1763
    %v1765 = vand.u32 %v1764, 4294901760
    %1766 = vmatmul.mubr.f32.gmra.mrb[0].mxu0 %v1765
    %v1767 = vpop.f32.mrb[0].mxu0
    %v1768 = vadd.f32 %v1525, %v1767
    %v1769 = vpop.f32.mrb[0].mxu0
    %1770 = vmatprep.mubr.f32.mxu0 0.0
    %v1771 = vand.u32 %v843, 4294901760
    %v1772 = vsub.f32 %v843, %v1771
    %v1773 = vand.u32 %v1772, 4294901760
    %1774 = vmatmul.mubr.f32.gmra.mrb[0].mxu0 %v1773
    %v1775 = vpop.f32.mrb[0].mxu0
    %v1776 = vadd.f32 %v1532, %v1775
    %v1777 = vpop.f32.mrb[0].mxu0
    %1778 = vmatprep.mubr.f32.mxu0 0.0
    %v1779 = vand.u32 %v846, 4294901760
    %v1780 = vsub.f32 %v846, %v1779
    %v1781 = vand.u32 %v1780, 4294901760
    %1782 = vmatmul.mubr.f32.gmra.mrb[0].mxu0 %v1781
    %v1783 = vpop.f32.mrb[0].mxu0
    %v1784 = vadd.f32 %v1539, %v1783
    %v1785 = vpop.f32.mrb[0].mxu0
    %1786 = vmatprep.mubr.f32.mxu0 0.0
    %v1787 = vand.u32 %v849, 4294901760
    %v1788 = vsub.f32 %v849, %v1787
    %v1789 = vand.u32 %v1788, 4294901760
    %1790 = vmatmul.mubr.f32.gmra.mrb[0].mxu0 %v1789
    %v1791 = vpop.f32.mrb[0].mxu0
    %v1792 = vadd.f32 %v1546, %v1791
    %v1793 = vpop.f32.mrb[0].mxu0
    %1794 = vmatprep.mubr.f32.mxu0 0.0
    %v1795 = vand.u32 %v852, 4294901760
    %v1796 = vsub.f32 %v852, %v1795
    %v1797 = vand.u32 %v1796, 4294901760
    %1798 = vmatmul.mubr.f32.gmra.mrb[0].mxu0 %v1797
    %v1799 = vpop.f32.mrb[0].mxu0
    %v1800 = vadd.f32 %v1553, %v1799
    %v1801 = vpop.f32.mrb[0].mxu0
    %1802 = vmatprep.mubr.f32.mxu0 0.0
    %v1803 = vand.u32 %v855, 4294901760
    %v1804 = vsub.f32 %v855, %v1803
    %v1805 = vand.u32 %v1804, 4294901760
    %1806 = vmatmul.mubr.f32.gmra.mrb[0].mxu0 %v1805
    %v1807 = vpop.f32.mrb[0].mxu0
    %v1808 = vadd.f32 %v1560, %v1807
    %v1809 = vpop.f32.mrb[0].mxu0
    %1810 = vmatprep.mubr.f32.mxu0 0.0
    %v1811 = vand.u32 %v858, 4294901760
    %v1812 = vsub.f32 %v858, %v1811
    %v1813 = vand.u32 %v1812, 4294901760
    %1814 = vmatmul.mubr.f32.gmra.mrb[0].mxu0 %v1813
    %v1815 = vpop.f32.mrb[0].mxu0
    %v1816 = vadd.f32 %v1567, %v1815
    %v1817 = vpop.f32.mrb[0].mxu0
    %1818 = vmatprep.mubr.f32.mxu0 0.0
    %v1819 = vand.u32 %v861, 4294901760
    %v1820 = vsub.f32 %v861, %v1819
    %v1821 = vand.u32 %v1820, 4294901760
    %1822 = vmatmul.mubr.f32.gmra.mrb[0].mxu0 %v1821
    %v1823 = vpop.f32.mrb[0].mxu0
    %v1824 = vadd.f32 %v1574, %v1823
    %v1825 = vpop.f32.mrb[0].mxu0
    %1826 = vmatprep.mubr.f32.mxu0 0.0
    %v1827 = vand.u32 %v864, 4294901760
    %v1828 = vsub.f32 %v864, %v1827
    %v1829 = vand.u32 %v1828, 4294901760
    %1830 = vmatmul.mubr.f32.gmra.mrb[0].mxu0 %v1829
    %v1831 = vpop.f32.mrb[0].mxu0
    %v1832 = vadd.f32 %v1581, %v1831
    %v1833 = vpop.f32.mrb[0].mxu0
    %1834 = vmatprep.mubr.f32.mxu0 0.0
    %v1835 = vand.u32 %v867, 4294901760
    %v1836 = vsub.f32 %v867, %v1835
    %v1837 = vand.u32 %v1836, 4294901760
    %1838 = vmatmul.mubr.f32.gmra.mrb[0].mxu0 %v1837
    %v1839 = vpop.f32.mrb[0].mxu0
    %v1840 = vadd.f32 %v1588, %v1839
    %v1841 = vpop.f32.mrb[0].mxu0
    %1842 = vmatprep.mubr.f32.mxu0 0.0
    %v1843 = vand.u32 %v870, 4294901760
    %v1844 = vsub.f32 %v870, %v1843
    %v1845 = vand.u32 %v1844, 4294901760
    %1846 = vmatmul.mubr.f32.gmra.mrb[0].mxu0 %v1845
    %v1847 = vpop.f32.mrb[0].mxu0
    %v1848 = vadd.f32 %v1595, %v1847
    %v1849 = vpop.f32.mrb[0].mxu0
    %1850 = vmatprep.mubr.f32.mxu0 0.0
    %v1851 = vand.u32 %v873, 4294901760
    %v1852 = vsub.f32 %v873, %v1851
    %v1853 = vand.u32 %v1852, 4294901760
    %1854 = vmatmul.mubr.f32.gmra.mrb[0].mxu0 %v1853
    %v1855 = vpop.f32.mrb[0].mxu0
    %v1856 = vadd.f32 %v1602, %v1855
    %v1857 = vpop.f32.mrb[0].mxu0
    %1858 = vmatprep.mubr.f32.mxu0 0.0
    %v1859 = vand.u32 %v876, 4294901760
    %v1860 = vsub.f32 %v876, %v1859
    %v1861 = vand.u32 %v1860, 4294901760
    %1862 = vmatmul.mubr.f32.gmra.mrb[0].mxu0 %v1861
    %v1863 = vpop.f32.mrb[0].mxu0
    %v1864 = vadd.f32 %v1609, %v1863
    %v1865 = vpop.f32.mrb[0].mxu0
    %1866 = vmatprep.mubr.f32.mxu0 0.0
    %v1867 = vand.u32 %v879, 4294901760
    %v1868 = vsub.f32 %v879, %v1867
    %v1869 = vand.u32 %v1868, 4294901760
    %1870 = vmatmul.mubr.f32.gmra.mrb[0].mxu0 %v1869
    %v1871 = vpop.f32.mrb[0].mxu0
    %v1872 = vadd.f32 %v1616, %v1871
    %v1873 = vpop.f32.mrb[0].mxu0
    %1874 = vmatprep.mubr.f32.mxu0 0.0
    %v1875 = vand.u32 %v882, 4294901760
    %v1876 = vsub.f32 %v882, %v1875
    %v1877 = vand.u32 %v1876, 4294901760
    %1878 = vmatmul.mubr.f32.gmra.mrb[0].mxu0 %v1877
    %v1879 = vpop.f32.mrb[0].mxu0
    %v1880 = vadd.f32 %v1623, %v1879
    %v1881 = vpop.f32.mrb[0].mxu0
    %1882 = vmatprep.mubr.f32.mxu0 0.0
    %v1883 = vand.u32 %v885, 4294901760
    %v1884 = vsub.f32 %v885, %v1883
    %v1885 = vand.u32 %v1884, 4294901760
    %1886 = vmatmul.mubr.f32.gmra.mrb[0].mxu0 %v1885
    %v1887 = vpop.f32.mrb[0].mxu0
    %v1888 = vadd.f32 %v1630, %v1887
    %v1889 = vpop.f32.mrb[0].mxu0
    %1890 = vmatprep.mubr.f32.mxu0 0.0
    %v1891 = vand.u32 %v888, 4294901760
    %v1892 = vsub.f32 %v888, %v1891
    %v1893 = vand.u32 %v1892, 4294901760
    %1894 = vmatmul.mubr.f32.gmra.mrb[0].mxu0 %v1893
    %v1895 = vpop.f32.mrb[0].mxu0
    %v1896 = vadd.f32 %v1637, %v1895
    %v1897 = vpop.f32.mrb[0].mxu0
    %1898 = vmatprep.mubr.f32.mxu0 0.0
    %v1899 = vand.u32 %v891, 4294901760
    %v1900 = vsub.f32 %v891, %v1899
    %v1901 = vand.u32 %v1900, 4294901760
    %1902 = vmatmul.mubr.f32.gmra.mrb[0].mxu0 %v1901
    %v1903 = vpop.f32.mrb[0].mxu0
    %v1904 = vadd.f32 %v1644, %v1903
    %v1905 = vpop.f32.mrb[0].mxu0
    %1906 = vmatprep.mubr.f32.mxu0 0.0
    %v1907 = vand.u32 %v894, 4294901760
    %v1908 = vsub.f32 %v894, %v1907
    %v1909 = vand.u32 %v1908, 4294901760
    %1910 = vmatmul.mubr.f32.gmra.mrb[0].mxu0 %v1909
    %v1911 = vpop.f32.mrb[0].mxu0
    %v1912 = vadd.f32 %v1651, %v1911
    %v1913 = vpop.f32.mrb[0].mxu0
    %1914 = vmatprep.mubr.f32.mxu0 0.0
    %v1915 = vand.u32 %v897, 4294901760
    %v1916 = vsub.f32 %v897, %v1915
    %v1917 = vand.u32 %v1916, 4294901760
    %1918 = vmatmul.mubr.f32.gmra.mrb[0].mxu0 %v1917
    %v1919 = vpop.f32.mrb[0].mxu0
    %v1920 = vadd.f32 %v1658, %v1919
    %v1921 = vpop.f32.mrb[0].mxu0
    %1922 = vmatprep.mubr.f32.mxu0 0.0
    %v1923 = vand.u32 %v900, 4294901760
    %v1924 = vsub.f32 %v900, %v1923
    %v1925 = vand.u32 %v1924, 4294901760
    %1926 = vmatmul.mubr.f32.gmra.mrb[0].mxu0 %v1925
    %v1927 = vpop.f32.mrb[0].mxu0
    %v1928 = vadd.f32 %v1665, %v1927
    %v1929 = vpop.f32.mrb[0].mxu0
    %1930 = vmatprep.mubr.f32.mxu0 0.0
    %v1931 = vand.u32 %v903, 4294901760
    %v1932 = vsub.f32 %v903, %v1931
    %v1933 = vand.u32 %v1932, 4294901760
    %1934 = vmatmul.mubr.f32.gmra.mrb[0].mxu0 %v1933
    %v1935 = vpop.f32.mrb[0].mxu0
    %v1936 = vadd.f32 %v1672, %v1935
    %v1937 = vpop.f32.mrb[0].mxu0
    %1938 = vmatprep.mubr.f32.mxu0 0.0
    %v1939 = vand.u32 %v906, 4294901760
    %v1940 = vsub.f32 %v906, %v1939
    %v1941 = vand.u32 %v1940, 4294901760
    %1942 = vmatmul.mubr.f32.gmra.mrb[0].mxu0 %v1941
    %v1943 = vpop.f32.mrb[0].mxu0
    %v1944 = vadd.f32 %v1679, %v1943
    %v1945 = vpop.f32.mrb[0].mxu0
    %1946 = vmatprep.mubr.f32.mxu0 0.0
    %v1947 = vand.u32 %v909, 4294901760
    %v1948 = vsub.f32 %v909, %v1947
    %v1949 = vand.u32 %v1948, 4294901760
    %1950 = vmatmul.mubr.f32.gmra.mrb[0].mxu0 %v1949
    %v1951 = vpop.f32.mrb[0].mxu0
    %v1952 = vadd.f32 %v1686, %v1951
    %v1953 = vpop.f32.mrb[0].mxu0
    %1954 = vdwg.mxu0
    %1955 = vmatprep.subr.mxu0 0.0
    %v1956 = vand.u32 %v834, 4294901760
    %v1957 = vsub.f32 %v834, %v1956
    %v1958 = vand.u32 %v1957, 4294901760
    %1959 = vmatpush1.msra.mxu0 %v1958
    %1960 = vmatprep.subr.mxu0 0.0
    %1961 = vmatpush1.msra.mxu0 0.0
    %1962 = vmatprep.subr.mxu0 0.0
    %1963 = vmatpush1.msra.mxu0 0.0
    %1964 = vmatprep.subr.mxu0 0.0
    %1965 = vmatpush1.msra.mxu0 0.0
    %1966 = vmatprep.subr.mxu0 0.0
    %1967 = vmatpush1.msra.mxu0 0.0
    %1968 = vmatprep.subr.mxu0 0.0
    %1969 = vmatpush1.msra.mxu0 0.0
    %1970 = vmatprep.subr.mxu0 0.0
    %1971 = vmatpush1.msra.mxu0 0.0
    %1972 = vmatprep.subr.mxu0 0.0
    %1973 = vmatpush1.msra.mxu0 0.0
    %1974 = vmatprep.subr.mxu0 0.0
    %1975 = vmatpush1.msra.mxu0 0.0
    %1976 = vmatprep.subr.mxu0 0.0
    %1977 = vmatpush1.msra.mxu0 0.0
    %1978 = vmatprep.subr.mxu0 0.0
    %1979 = vmatpush1.msra.mxu0 0.0
    %1980 = vmatprep.subr.mxu0 0.0
    %1981 = vmatpush1.msra.mxu0 0.0
    %1982 = vmatprep.subr.mxu0 0.0
    %1983 = vmatpush1.msra.mxu0 0.0
    %1984 = vmatprep.subr.mxu0 0.0
    %1985 = vmatpush1.msra.mxu0 0.0
    %1986 = vmatprep.subr.mxu0 0.0
    %1987 = vmatpush1.msra.mxu0 0.0
    %1988 = vmatprep.subr.mxu0 0.0
    %1989 = vmatpush1.msra.mxu0 0.0
    %1990 = vmatprep.subr.mxu0 0.0
    %1991 = vmatpush1.msra.mxu0 0.0
    %1992 = vmatprep.subr.mxu0 0.0
    %1993 = vmatpush1.msra.mxu0 0.0
    %1994 = vmatprep.subr.mxu0 0.0
    %1995 = vmatpush1.msra.mxu0 0.0
    %1996 = vmatprep.subr.mxu0 0.0
    %1997 = vmatpush1.msra.mxu0 0.0
    %1998 = vmatprep.subr.mxu0 0.0
    %1999 = vmatpush1.msra.mxu0 0.0
    %2000 = vmatprep.subr.mxu0 0.0
    %2001 = vmatpush1.msra.mxu0 0.0
    %2002 = vmatprep.subr.mxu0 0.0
    %2003 = vmatpush1.msra.mxu0 0.0
    %2004 = vmatprep.subr.mxu0 0.0
    %2005 = vmatpush1.msra.mxu0 0.0
    %2006 = vmatprep.subr.mxu0 0.0
    %2007 = vmatpush1.msra.mxu0 0.0
    %2008 = vmatprep.subr.mxu0 0.0
    %2009 = vmatpush1.msra.mxu0 0.0
    %2010 = vmatprep.subr.mxu0 0.0
    %2011 = vmatpush1.msra.mxu0 0.0
    %2012 = vmatprep.subr.mxu0 0.0
    %2013 = vmatpush1.msra.mxu0 0.0
    %2014 = vmatprep.subr.mxu0 0.0
    %2015 = vmatpush1.msra.mxu0 0.0
    %2016 = vmatprep.subr.mxu0 0.0
    %2017 = vmatpush1.msra.mxu0 0.0
    %2018 = vmatprep.subr.mxu0 0.0
    %2019 = vmatpush1.msra.mxu0 0.0
    %2020 = vmatprep.subr.mxu0 0.0
    %2021 = vmatpush1.msra.mxu0 0.0
    %2022 = vmatprep.mubr.f32.mxu0 0.0
    %v2023 = vand.u32 %v837, 4294901760
    %2024 = vmatmul.mubr.f32.gmra.mrb[0].mxu0 %v2023
    %v2025 = vpop.f32.mrb[0].mxu0
    %v2026 = vadd.f32 %v1760, %v2025
    %v2027 = vpop.f32.mrb[0].mxu0
    %2028 = vmatprep.mubr.f32.mxu0 0.0
    %v2029 = vand.u32 %v840, 4294901760
    %2030 = vmatmul.mubr.f32.gmra.mrb[0].mxu0 %v2029
    %v2031 = vpop.f32.mrb[0].mxu0
    %v2032 = vadd.f32 %v1768, %v2031
    %v2033 = vpop.f32.mrb[0].mxu0
    %2034 = vmatprep.mubr.f32.mxu0 0.0
    %v2035 = vand.u32 %v843, 4294901760
    %2036 = vmatmul.mubr.f32.gmra.mrb[0].mxu0 %v2035
    %v2037 = vpop.f32.mrb[0].mxu0
    %v2038 = vadd.f32 %v1776, %v2037
    %v2039 = vpop.f32.mrb[0].mxu0
    %2040 = vmatprep.mubr.f32.mxu0 0.0
    %v2041 = vand.u32 %v846, 4294901760
    %2042 = vmatmul.mubr.f32.gmra.mrb[0].mxu0 %v2041
    %v2043 = vpop.f32.mrb[0].mxu0
    %v2044 = vadd.f32 %v1784, %v2043
    %v2045 = vpop.f32.mrb[0].mxu0
    %2046 = vmatprep.mubr.f32.mxu0 0.0
    %v2047 = vand.u32 %v849, 4294901760
    %2048 = vmatmul.mubr.f32.gmra.mrb[0].mxu0 %v2047
    %v2049 = vpop.f32.mrb[0].mxu0
    %v2050 = vadd.f32 %v1792, %v2049
    %v2051 = vpop.f32.mrb[0].mxu0
    %2052 = vmatprep.mubr.f32.mxu0 0.0
    %v2053 = vand.u32 %v852, 4294901760
    %2054 = vmatmul.mubr.f32.gmra.mrb[0].mxu0 %v2053
    %v2055 = vpop.f32.mrb[0].mxu0
    %v2056 = vadd.f32 %v1800, %v2055
    %v2057 = vpop.f32.mrb[0].mxu0
    %2058 = vmatprep.mubr.f32.mxu0 0.0
    %v2059 = vand.u32 %v855, 4294901760
    %2060 = vmatmul.mubr.f32.gmra.mrb[0].mxu0 %v2059
    %v2061 = vpop.f32.mrb[0].mxu0
    %v2062 = vadd.f32 %v1808, %v2061
    %v2063 = vpop.f32.mrb[0].mxu0
    %2064 = vmatprep.mubr.f32.mxu0 0.0
    %v2065 = vand.u32 %v858, 4294901760
    %2066 = vmatmul.mubr.f32.gmra.mrb[0].mxu0 %v2065
    %v2067 = vpop.f32.mrb[0].mxu0
    %v2068 = vadd.f32 %v1816, %v2067
    %v2069 = vpop.f32.mrb[0].mxu0
    %2070 = vmatprep.mubr.f32.mxu0 0.0
    %v2071 = vand.u32 %v861, 4294901760
    %2072 = vmatmul.mubr.f32.gmra.mrb[0].mxu0 %v2071
    %v2073 = vpop.f32.mrb[0].mxu0
    %v2074 = vadd.f32 %v1824, %v2073
    %v2075 = vpop.f32.mrb[0].mxu0
    %2076 = vmatprep.mubr.f32.mxu0 0.0
    %v2077 = vand.u32 %v864, 4294901760
    %2078 = vmatmul.mubr.f32.gmra.mrb[0].mxu0 %v2077
    %v2079 = vpop.f32.mrb[0].mxu0
    %v2080 = vadd.f32 %v1832, %v2079
    %v2081 = vpop.f32.mrb[0].mxu0
    %2082 = vmatprep.mubr.f32.mxu0 0.0
    %v2083 = vand.u32 %v867, 4294901760
    %2084 = vmatmul.mubr.f32.gmra.mrb[0].mxu0 %v2083
    %v2085 = vpop.f32.mrb[0].mxu0
    %v2086 = vadd.f32 %v1840, %v2085
    %v2087 = vpop.f32.mrb[0].mxu0
    %2088 = vmatprep.mubr.f32.mxu0 0.0
    %v2089 = vand.u32 %v870, 4294901760
    %2090 = vmatmul.mubr.f32.gmra.mrb[0].mxu0 %v2089
    %v2091 = vpop.f32.mrb[0].mxu0
    %v2092 = vadd.f32 %v1848, %v2091
    %v2093 = vpop.f32.mrb[0].mxu0
    %2094 = vmatprep.mubr.f32.mxu0 0.0
    %v2095 = vand.u32 %v873, 4294901760
    %2096 = vmatmul.mubr.f32.gmra.mrb[0].mxu0 %v2095
    %v2097 = vpop.f32.mrb[0].mxu0
    %v2098 = vadd.f32 %v1856, %v2097
    %v2099 = vpop.f32.mrb[0].mxu0
    %2100 = vmatprep.mubr.f32.mxu0 0.0
    %v2101 = vand.u32 %v876, 4294901760
    %2102 = vmatmul.mubr.f32.gmra.mrb[0].mxu0 %v2101
    %v2103 = vpop.f32.mrb[0].mxu0
    %v2104 = vadd.f32 %v1864, %v2103
    %v2105 = vpop.f32.mrb[0].mxu0
    %2106 = vmatprep.mubr.f32.mxu0 0.0
    %v2107 = vand.u32 %v879, 4294901760
    %2108 = vmatmul.mubr.f32.gmra.mrb[0].mxu0 %v2107
    %v2109 = vpop.f32.mrb[0].mxu0
    %v2110 = vadd.f32 %v1872, %v2109
    %v2111 = vpop.f32.mrb[0].mxu0
    %2112 = vmatprep.mubr.f32.mxu0 0.0
    %v2113 = vand.u32 %v882, 4294901760
    %2114 = vmatmul.mubr.f32.gmra.mrb[0].mxu0 %v2113
    %v2115 = vpop.f32.mrb[0].mxu0
    %v2116 = vadd.f32 %v1880, %v2115
    %v2117 = vpop.f32.mrb[0].mxu0
    %2118 = vmatprep.mubr.f32.mxu0 0.0
    %v2119 = vand.u32 %v885, 4294901760
    %2120 = vmatmul.mubr.f32.gmra.mrb[0].mxu0 %v2119
    %v2121 = vpop.f32.mrb[0].mxu0
    %v2122 = vadd.f32 %v1888, %v2121
    %v2123 = vpop.f32.mrb[0].mxu0
    %2124 = vmatprep.mubr.f32.mxu0 0.0
    %v2125 = vand.u32 %v888, 4294901760
    %2126 = vmatmul.mubr.f32.gmra.mrb[0].mxu0 %v2125
    %v2127 = vpop.f32.mrb[0].mxu0
    %v2128 = vadd.f32 %v1896, %v2127
    %v2129 = vpop.f32.mrb[0].mxu0
    %2130 = vmatprep.mubr.f32.mxu0 0.0
    %v2131 = vand.u32 %v891, 4294901760
    %2132 = vmatmul.mubr.f32.gmra.mrb[0].mxu0 %v2131
    %v2133 = vpop.f32.mrb[0].mxu0
    %v2134 = vadd.f32 %v1904, %v2133
    %v2135 = vpop.f32.mrb[0].mxu0
    %2136 = vmatprep.mubr.f32.mxu0 0.0
    %v2137 = vand.u32 %v894, 4294901760
    %2138 = vmatmul.mubr.f32.gmra.mrb[0].mxu0 %v2137
    %v2139 = vpop.f32.mrb[0].mxu0
    %v2140 = vadd.f32 %v1912, %v2139
    %v2141 = vpop.f32.mrb[0].mxu0
    %2142 = vmatprep.mubr.f32.mxu0 0.0
    %v2143 = vand.u32 %v897, 4294901760
    %2144 = vmatmul.mubr.f32.gmra.mrb[0].mxu0 %v2143
    %v2145 = vpop.f32.mrb[0].mxu0
    %v2146 = vadd.f32 %v1920, %v2145
    %v2147 = vpop.f32.mrb[0].mxu0
    %2148 = vmatprep.mubr.f32.mxu0 0.0
    %v2149 = vand.u32 %v900, 4294901760
    %2150 = vmatmul.mubr.f32.gmra.mrb[0].mxu0 %v2149
    %v2151 = vpop.f32.mrb[0].mxu0
    %v2152 = vadd.f32 %v1928, %v2151
    %v2153 = vpop.f32.mrb[0].mxu0
    %2154 = vmatprep.mubr.f32.mxu0 0.0
    %v2155 = vand.u32 %v903, 4294901760
    %2156 = vmatmul.mubr.f32.gmra.mrb[0].mxu0 %v2155
    %v2157 = vpop.f32.mrb[0].mxu0
    %v2158 = vadd.f32 %v1936, %v2157
    %v2159 = vpop.f32.mrb[0].mxu0
    %2160 = vmatprep.mubr.f32.mxu0 0.0
    %v2161 = vand.u32 %v906, 4294901760
    %2162 = vmatmul.mubr.f32.gmra.mrb[0].mxu0 %v2161
    %v2163 = vpop.f32.mrb[0].mxu0
    %v2164 = vadd.f32 %v1944, %v2163
    %v2165 = vpop.f32.mrb[0].mxu0
    %2166 = vmatprep.mubr.f32.mxu0 0.0
    %v2167 = vand.u32 %v909, 4294901760
    %2168 = vmatmul.mubr.f32.gmra.mrb[0].mxu0 %v2167
    %v2169 = vpop.f32.mrb[0].mxu0
    %v2170 = vadd.f32 %v1952, %v2169
    %v2171 = vpop.f32.mrb[0].mxu0
    %2172 = vdwg.mxu0
    %2173 = vmatprep.subr.mxu0 0.0
    %v2174 = vand.u32 %v834, 4294901760
    %2175 = vmatpush1.msra.mxu0 %v2174
    %2176 = vmatprep.subr.mxu0 0.0
    %2177 = vmatpush1.msra.mxu0 0.0
    %2178 = vmatprep.subr.mxu0 0.0
    %2179 = vmatpush1.msra.mxu0 0.0
    %2180 = vmatprep.subr.mxu0 0.0
    %2181 = vmatpush1.msra.mxu0 0.0
    %2182 = vmatprep.subr.mxu0 0.0
    %2183 = vmatpush1.msra.mxu0 0.0
    %2184 = vmatprep.subr.mxu0 0.0
    %2185 = vmatpush1.msra.mxu0 0.0
    %2186 = vmatprep.subr.mxu0 0.0
    %2187 = vmatpush1.msra.mxu0 0.0
    %2188 = vmatprep.subr.mxu0 0.0
    %2189 = vmatpush1.msra.mxu0 0.0
    %2190 = vmatprep.subr.mxu0 0.0
    %2191 = vmatpush1.msra.mxu0 0.0
    %2192 = vmatprep.subr.mxu0 0.0
    %2193 = vmatpush1.msra.mxu0 0.0
    %2194 = vmatprep.subr.mxu0 0.0
    %2195 = vmatpush1.msra.mxu0 0.0
    %2196 = vmatprep.subr.mxu0 0.0
    %2197 = vmatpush1.msra.mxu0 0.0
    %2198 = vmatprep.subr.mxu0 0.0
    %2199 = vmatpush1.msra.mxu0 0.0
    %2200 = vmatprep.subr.mxu0 0.0
    %2201 = vmatpush1.msra.mxu0 0.0
    %2202 = vmatprep.subr.mxu0 0.0
    %2203 = vmatpush1.msra.mxu0 0.0
    %2204 = vmatprep.subr.mxu0 0.0
    %2205 = vmatpush1.msra.mxu0 0.0
    %2206 = vmatprep.subr.mxu0 0.0
    %2207 = vmatpush1.msra.mxu0 0.0
    %2208 = vmatprep.subr.mxu0 0.0
    %2209 = vmatpush1.msra.mxu0 0.0
    %2210 = vmatprep.subr.mxu0 0.0
    %2211 = vmatpush1.msra.mxu0 0.0
    %2212 = vmatprep.subr.mxu0 0.0
    %2213 = vmatpush1.msra.mxu0 0.0
    %2214 = vmatprep.subr.mxu0 0.0
    %2215 = vmatpush1.msra.mxu0 0.0
    %2216 = vmatprep.subr.mxu0 0.0
    %2217 = vmatpush1.msra.mxu0 0.0
    %2218 = vmatprep.subr.mxu0 0.0
    %2219 = vmatpush1.msra.mxu0 0.0
    %2220 = vmatprep.subr.mxu0 0.0
    %2221 = vmatpush1.msra.mxu0 0.0
    %2222 = vmatprep.subr.mxu0 0.0
    %2223 = vmatpush1.msra.mxu0 0.0
    %2224 = vmatprep.subr.mxu0 0.0
    %2225 = vmatpush1.msra.mxu0 0.0
    %2226 = vmatprep.subr.mxu0 0.0
    %2227 = vmatpush1.msra.mxu0 0.0
    %2228 = vmatprep.subr.mxu0 0.0
    %2229 = vmatpush1.msra.mxu0 0.0
    %2230 = vmatprep.subr.mxu0 0.0
    %2231 = vmatpush1.msra.mxu0 0.0
    %2232 = vmatprep.subr.mxu0 0.0
    %2233 = vmatpush1.msra.mxu0 0.0
    %2234 = vmatprep.subr.mxu0 0.0
    %2235 = vmatpush1.msra.mxu0 0.0
    %2236 = vmatprep.subr.mxu0 0.0
    %2237 = vmatpush1.msra.mxu0 0.0
    %2238 = vmatprep.mubr.f32.mxu0 0.0
    %v2239 = vand.u32 %v837, 4294901760
    %2240 = vmatmul.mubr.f32.gmra.mrb[0].mxu0 %v2239
    %v2241 = vpop.f32.mrb[0].mxu0
    %v2242 = vadd.f32 %v2026, %v2241
    %v2243 = vpop.f32.mrb[0].mxu0
    %2244 = vmatprep.mubr.f32.mxu0 0.0
    %v2245 = vand.u32 %v840, 4294901760
    %2246 = vmatmul.mubr.f32.gmra.mrb[0].mxu0 %v2245
    %v2247 = vpop.f32.mrb[0].mxu0
    %v2248 = vadd.f32 %v2032, %v2247
    %v2249 = vpop.f32.mrb[0].mxu0
    %2250 = vmatprep.mubr.f32.mxu0 0.0
    %v2251 = vand.u32 %v843, 4294901760
    %2252 = vmatmul.mubr.f32.gmra.mrb[0].mxu0 %v2251
    %v2253 = vpop.f32.mrb[0].mxu0
    %v2254 = vadd.f32 %v2038, %v2253
    %v2255 = vpop.f32.mrb[0].mxu0
    %2256 = vmatprep.mubr.f32.mxu0 0.0
    %v2257 = vand.u32 %v846, 4294901760
    %2258 = vmatmul.mubr.f32.gmra.mrb[0].mxu0 %v2257
    %v2259 = vpop.f32.mrb[0].mxu0
    %v2260 = vadd.f32 %v2044, %v2259
    %v2261 = vpop.f32.mrb[0].mxu0
    %2262 = vmatprep.mubr.f32.mxu0 0.0
    %v2263 = vand.u32 %v849, 4294901760
    %2264 = vmatmul.mubr.f32.gmra.mrb[0].mxu0 %v2263
    %v2265 = vpop.f32.mrb[0].mxu0
    %v2266 = vadd.f32 %v2050, %v2265
    %v2267 = vpop.f32.mrb[0].mxu0
    %2268 = vmatprep.mubr.f32.mxu0 0.0
    %v2269 = vand.u32 %v852, 4294901760
    %2270 = vmatmul.mubr.f32.gmra.mrb[0].mxu0 %v2269
    %v2271 = vpop.f32.mrb[0].mxu0
    %v2272 = vadd.f32 %v2056, %v2271
    %v2273 = vpop.f32.mrb[0].mxu0
    %2274 = vmatprep.mubr.f32.mxu0 0.0
    %v2275 = vand.u32 %v855, 4294901760
    %2276 = vmatmul.mubr.f32.gmra.mrb[0].mxu0 %v2275
    %v2277 = vpop.f32.mrb[0].mxu0
    %v2278 = vadd.f32 %v2062, %v2277
    %v2279 = vpop.f32.mrb[0].mxu0
    %2280 = vmatprep.mubr.f32.mxu0 0.0
    %v2281 = vand.u32 %v858, 4294901760
    %2282 = vmatmul.mubr.f32.gmra.mrb[0].mxu0 %v2281
    %v2283 = vpop.f32.mrb[0].mxu0
    %v2284 = vadd.f32 %v2068, %v2283
    %v2285 = vpop.f32.mrb[0].mxu0
    %2286 = vmatprep.mubr.f32.mxu0 0.0
    %v2287 = vand.u32 %v861, 4294901760
    %2288 = vmatmul.mubr.f32.gmra.mrb[0].mxu0 %v2287
    %v2289 = vpop.f32.mrb[0].mxu0
    %v2290 = vadd.f32 %v2074, %v2289
    %v2291 = vpop.f32.mrb[0].mxu0
    %2292 = vmatprep.mubr.f32.mxu0 0.0
    %v2293 = vand.u32 %v864, 4294901760
    %2294 = vmatmul.mubr.f32.gmra.mrb[0].mxu0 %v2293
    %v2295 = vpop.f32.mrb[0].mxu0
    %v2296 = vadd.f32 %v2080, %v2295
    %v2297 = vpop.f32.mrb[0].mxu0
    %2298 = vmatprep.mubr.f32.mxu0 0.0
    %v2299 = vand.u32 %v867, 4294901760
    %2300 = vmatmul.mubr.f32.gmra.mrb[0].mxu0 %v2299
    %v2301 = vpop.f32.mrb[0].mxu0
    %v2302 = vadd.f32 %v2086, %v2301
    %v2303 = vpop.f32.mrb[0].mxu0
    %2304 = vmatprep.mubr.f32.mxu0 0.0
    %v2305 = vand.u32 %v870, 4294901760
    %2306 = vmatmul.mubr.f32.gmra.mrb[0].mxu0 %v2305
    %v2307 = vpop.f32.mrb[0].mxu0
    %v2308 = vadd.f32 %v2092, %v2307
    %v2309 = vpop.f32.mrb[0].mxu0
    %2310 = vmatprep.mubr.f32.mxu0 0.0
    %v2311 = vand.u32 %v873, 4294901760
    %2312 = vmatmul.mubr.f32.gmra.mrb[0].mxu0 %v2311
    %v2313 = vpop.f32.mrb[0].mxu0
    %v2314 = vadd.f32 %v2098, %v2313
    %v2315 = vpop.f32.mrb[0].mxu0
    %2316 = vmatprep.mubr.f32.mxu0 0.0
    %v2317 = vand.u32 %v876, 4294901760
    %2318 = vmatmul.mubr.f32.gmra.mrb[0].mxu0 %v2317
    %v2319 = vpop.f32.mrb[0].mxu0
    %v2320 = vadd.f32 %v2104, %v2319
    %v2321 = vpop.f32.mrb[0].mxu0
    %2322 = vmatprep.mubr.f32.mxu0 0.0
    %v2323 = vand.u32 %v879, 4294901760
    %2324 = vmatmul.mubr.f32.gmra.mrb[0].mxu0 %v2323
    %v2325 = vpop.f32.mrb[0].mxu0
    %v2326 = vadd.f32 %v2110, %v2325
    %v2327 = vpop.f32.mrb[0].mxu0
    %2328 = vmatprep.mubr.f32.mxu0 0.0
    %v2329 = vand.u32 %v882, 4294901760
    %2330 = vmatmul.mubr.f32.gmra.mrb[0].mxu0 %v2329
    %v2331 = vpop.f32.mrb[0].mxu0
    %v2332 = vadd.f32 %v2116, %v2331
    %v2333 = vpop.f32.mrb[0].mxu0
    %2334 = vmatprep.mubr.f32.mxu0 0.0
    %v2335 = vand.u32 %v885, 4294901760
    %2336 = vmatmul.mubr.f32.gmra.mrb[0].mxu0 %v2335
    %v2337 = vpop.f32.mrb[0].mxu0
    %v2338 = vadd.f32 %v2122, %v2337
    %v2339 = vpop.f32.mrb[0].mxu0
    %2340 = vmatprep.mubr.f32.mxu0 0.0
    %v2341 = vand.u32 %v888, 4294901760
    %2342 = vmatmul.mubr.f32.gmra.mrb[0].mxu0 %v2341
    %v2343 = vpop.f32.mrb[0].mxu0
    %v2344 = vadd.f32 %v2128, %v2343
    %v2345 = vpop.f32.mrb[0].mxu0
    %2346 = vmatprep.mubr.f32.mxu0 0.0
    %v2347 = vand.u32 %v891, 4294901760
    %2348 = vmatmul.mubr.f32.gmra.mrb[0].mxu0 %v2347
    %v2349 = vpop.f32.mrb[0].mxu0
    %v2350 = vadd.f32 %v2134, %v2349
    %v2351 = vpop.f32.mrb[0].mxu0
    %2352 = vmatprep.mubr.f32.mxu0 0.0
    %v2353 = vand.u32 %v894, 4294901760
    %2354 = vmatmul.mubr.f32.gmra.mrb[0].mxu0 %v2353
    %v2355 = vpop.f32.mrb[0].mxu0
    %v2356 = vadd.f32 %v2140, %v2355
    %v2357 = vpop.f32.mrb[0].mxu0
    %2358 = vmatprep.mubr.f32.mxu0 0.0
    %v2359 = vand.u32 %v897, 4294901760
    %2360 = vmatmul.mubr.f32.gmra.mrb[0].mxu0 %v2359
    %v2361 = vpop.f32.mrb[0].mxu0
    %v2362 = vadd.f32 %v2146, %v2361
    %v2363 = vpop.f32.mrb[0].mxu0
    %2364 = vmatprep.mubr.f32.mxu0 0.0
    %v2365 = vand.u32 %v900, 4294901760
    %2366 = vmatmul.mubr.f32.gmra.mrb[0].mxu0 %v2365
    %v2367 = vpop.f32.mrb[0].mxu0
    %v2368 = vadd.f32 %v2152, %v2367
    %v2369 = vpop.f32.mrb[0].mxu0
    %2370 = vmatprep.mubr.f32.mxu0 0.0
    %v2371 = vand.u32 %v903, 4294901760
    %2372 = vmatmul.mubr.f32.gmra.mrb[0].mxu0 %v2371
    %v2373 = vpop.f32.mrb[0].mxu0
    %v2374 = vadd.f32 %v2158, %v2373
    %v2375 = vpop.f32.mrb[0].mxu0
    %2376 = vmatprep.mubr.f32.mxu0 0.0
    %v2377 = vand.u32 %v906, 4294901760
    %2378 = vmatmul.mubr.f32.gmra.mrb[0].mxu0 %v2377
    %v2379 = vpop.f32.mrb[0].mxu0
    %v2380 = vadd.f32 %v2164, %v2379
    %v2381 = vpop.f32.mrb[0].mxu0
    %2382 = vmatprep.mubr.f32.mxu0 0.0
    %v2383 = vand.u32 %v909, 4294901760
    %2384 = vmatmul.mubr.f32.gmra.mrb[0].mxu0 %v2383
    %v2385 = vpop.f32.mrb[0].mxu0
    %v2386 = vadd.f32 %v2170, %v2385
    %v2387 = vpop.f32.mrb[0].mxu0
    %2388 = vdwg.mxu0
    %v2389 = vld [vmem:[%s3] sm:$0x1]
    %v2391 = vlaneseq
    %v2392 = vshrl.u32 %v2391, 7
    %v2393 = vsub.s32 0, %v2392
    %v2394 = vrot.slane %v2389, %v2393
    %v2396 = vmul.f32 %v2394, %v2242
    %v2397 = vmul.f32 %v2394, %v2248
    %v2398 = vmul.f32 %v2394, %v2254
    %v2399 = vmul.f32 %v2394, %v2260
    %v2400 = vmul.f32 %v2394, %v2266
    %v2401 = vmul.f32 %v2394, %v2272
    %v2402 = vmul.f32 %v2394, %v2278
    %v2403 = vmul.f32 %v2394, %v2284
    %v2404 = vmul.f32 %v2394, %v2290
    %v2405 = vmul.f32 %v2394, %v2296
    %v2406 = vmul.f32 %v2394, %v2302
    %v2407 = vmul.f32 %v2394, %v2308
    %v2408 = vmul.f32 %v2394, %v2314
    %v2409 = vmul.f32 %v2394, %v2320
    %v2410 = vmul.f32 %v2394, %v2326
    %v2411 = vmul.f32 %v2394, %v2332
    %v2412 = vmul.f32 %v2394, %v2338
    %v2413 = vmul.f32 %v2394, %v2344
    %v2414 = vmul.f32 %v2394, %v2350
    %v2415 = vmul.f32 %v2394, %v2356
    %v2416 = vmul.f32 %v2394, %v2362
    %v2417 = vmul.f32 %v2394, %v2368
    %v2418 = vmul.f32 %v2394, %v2374
    %v2419 = vmul.f32 %v2394, %v2380
    %v2420 = vmul.f32 %v2394, %v2386
    %v2421 = vadd.f32 %v784, %v2396
    %v2422 = vadd.f32 %v785, %v2397
    %v2423 = vadd.f32 %v786, %v2398
    %v2424 = vadd.f32 %v787, %v2399
    %v2425 = vadd.f32 %v788, %v2400
    %v2426 = vadd.f32 %v789, %v2401
    %v2427 = vadd.f32 %v790, %v2402
    %v2428 = vadd.f32 %v791, %v2403
    %v2429 = vadd.f32 %v792, %v2404
    %v2430 = vadd.f32 %v793, %v2405
    %v2431 = vadd.f32 %v794, %v2406
    %v2432 = vadd.f32 %v795, %v2407
    %v2433 = vadd.f32 %v796, %v2408
    %v2434 = vadd.f32 %v797, %v2409
    %v2435 = vadd.f32 %v798, %v2410
    %v2436 = vadd.f32 %v799, %v2411
    %v2437 = vadd.f32 %v800, %v2412
    %v2438 = vadd.f32 %v801, %v2413
    %v2439 = vadd.f32 %v802, %v2414
    %v2440 = vadd.f32 %v803, %v2415
    %v2441 = vadd.f32 %v804, %v2416
    %v2442 = vadd.f32 %v805, %v2417
    %v2443 = vadd.f32 %v806, %v2418
    %v2444 = vadd.f32 %v807, %v2419
    %v2445 = vadd.f32 %v808, %v2420
    %v2446 = vmul.f32 %v2242, %v2242
    %v2447 = vmul.f32 %v2248, %v2248
    %v2448 = vmul.f32 %v2254, %v2254
    %v2449 = vmul.f32 %v2260, %v2260
    %v2450 = vmul.f32 %v2266, %v2266
    %v2451 = vmul.f32 %v2272, %v2272
    %v2452 = vmul.f32 %v2278, %v2278
    %v2453 = vmul.f32 %v2284, %v2284
    %v2454 = vmul.f32 %v2290, %v2290
    %v2455 = vmul.f32 %v2296, %v2296
    %v2456 = vmul.f32 %v2302, %v2302
    %v2457 = vmul.f32 %v2308, %v2308
    %v2458 = vmul.f32 %v2314, %v2314
    %v2459 = vmul.f32 %v2320, %v2320
    %v2460 = vmul.f32 %v2326, %v2326
    %v2461 = vmul.f32 %v2332, %v2332
    %v2462 = vmul.f32 %v2338, %v2338
    %v2463 = vmul.f32 %v2344, %v2344
    %v2464 = vmul.f32 %v2350, %v2350
    %v2465 = vmul.f32 %v2356, %v2356
    %v2466 = vmul.f32 %v2362, %v2362
    %v2467 = vmul.f32 %v2368, %v2368
    %v2468 = vmul.f32 %v2374, %v2374
    %v2469 = vmul.f32 %v2380, %v2380
    %v2470 = vmul.f32 %v2386, %v2386
    %2471 = vadd.xlane.f32.xlu0 %v2446
    %v2472 = vpop.xlane.xlu0 %2471
    %2473 = vadd.xlane.f32.xlu0 %v2447
    %v2474 = vpop.xlane.xlu0 %2473
    %2475 = vadd.xlane.f32.xlu0 %v2448
    %v2476 = vpop.xlane.xlu0 %2475
    %2477 = vadd.xlane.f32.xlu0 %v2449
    %v2478 = vpop.xlane.xlu0 %2477
    %2479 = vadd.xlane.f32.xlu0 %v2450
    %v2480 = vpop.xlane.xlu0 %2479
    %2481 = vadd.xlane.f32.xlu0 %v2451
    %v2482 = vpop.xlane.xlu0 %2481
    %2483 = vadd.xlane.f32.xlu0 %v2452
    %v2484 = vpop.xlane.xlu0 %2483
    %2485 = vadd.xlane.f32.xlu0 %v2453
    %v2486 = vpop.xlane.xlu0 %2485
    %2487 = vadd.xlane.f32.xlu0 %v2454
    %v2488 = vpop.xlane.xlu0 %2487
    %2489 = vadd.xlane.f32.xlu0 %v2455
    %v2490 = vpop.xlane.xlu0 %2489
    %2491 = vadd.xlane.f32.xlu0 %v2456
    %v2492 = vpop.xlane.xlu0 %2491
    %2493 = vadd.xlane.f32.xlu0 %v2457
    %v2494 = vpop.xlane.xlu0 %2493
    %2495 = vadd.xlane.f32.xlu0 %v2458
    %v2496 = vpop.xlane.xlu0 %2495
    %2497 = vadd.xlane.f32.xlu0 %v2459
    %v2498 = vpop.xlane.xlu0 %2497
    %2499 = vadd.xlane.f32.xlu0 %v2460
    %v2500 = vpop.xlane.xlu0 %2499
    %2501 = vadd.xlane.f32.xlu0 %v2461
    %v2502 = vpop.xlane.xlu0 %2501
    %2503 = vadd.xlane.f32.xlu0 %v2462
    %v2504 = vpop.xlane.xlu0 %2503
    %2505 = vadd.xlane.f32.xlu0 %v2463
    %v2506 = vpop.xlane.xlu0 %2505
    %2507 = vadd.xlane.f32.xlu0 %v2464
    %v2508 = vpop.xlane.xlu0 %2507
    %2509 = vadd.xlane.f32.xlu0 %v2465
    %v2510 = vpop.xlane.xlu0 %2509
    %2511 = vadd.xlane.f32.xlu0 %v2466
    %v2512 = vpop.xlane.xlu0 %2511
    %2513 = vadd.xlane.f32.xlu0 %v2467
    %v2514 = vpop.xlane.xlu0 %2513
    %2515 = vadd.xlane.f32.xlu0 %v2468
    %v2516 = vpop.xlane.xlu0 %2515
    %2517 = vadd.xlane.f32.xlu0 %v2469
    %v2518 = vpop.xlane.xlu0 %2517
    %2519 = vadd.xlane.f32.xlu0 %v2470
    %v2520 = vpop.xlane.xlu0 %2519
    %vm2521 = vcmp.eq.s32.totalorder %v757, 4
    %v2522 = vmul.f32 %v2472, -0.5
    %v2523 = vmul.f32 %v2474, -0.5
    %v2524 = vmul.f32 %v2476, -0.5
    %v2525 = vmul.f32 %v2478, -0.5
    %v2526 = vmul.f32 %v2480, -0.5
    %v2527 = vmul.f32 %v2482, -0.5
    %v2528 = vmul.f32 %v2484, -0.5
    %v2529 = vmul.f32 %v2486, -0.5
    %v2530 = vmul.f32 %v2488, -0.5
    %v2531 = vmul.f32 %v2490, -0.5
    %v2532 = vmul.f32 %v2492, -0.5
    %v2533 = vmul.f32 %v2494, -0.5
    %v2534 = vmul.f32 %v2496, -0.5
    %v2535 = vmul.f32 %v2498, -0.5
    %v2536 = vmul.f32 %v2500, -0.5
    %v2537 = vmul.f32 %v2502, -0.5
    %v2538 = vmul.f32 %v2504, -0.5
    %v2539 = vmul.f32 %v2506, -0.5
    %v2540 = vmul.f32 %v2508, -0.5
    %v2541 = vmul.f32 %v2510, -0.5
    %v2542 = vmul.f32 %v2512, -0.5
    %v2543 = vmul.f32 %v2514, -0.5
    %v2544 = vmul.f32 %v2516, -0.5
    %v2545 = vmul.f32 %v2518, -0.5
    %v2546 = vmul.f32 %v2520, -0.5
    %v2547 = vsel %vm2521, %v2522, 0.0
    %v2548 = vsel %vm2521, %v2523, 0.0
    %v2549 = vsel %vm2521, %v2524, 0.0
    %v2550 = vsel %vm2521, %v2525, 0.0
    %v2551 = vsel %vm2521, %v2526, 0.0
    %v2552 = vsel %vm2521, %v2527, 0.0
    %v2553 = vsel %vm2521, %v2528, 0.0
    %v2554 = vsel %vm2521, %v2529, 0.0
    %v2555 = vsel %vm2521, %v2530, 0.0
    %v2556 = vsel %vm2521, %v2531, 0.0
    %v2557 = vsel %vm2521, %v2532, 0.0
    %v2558 = vsel %vm2521, %v2533, 0.0
    %v2559 = vsel %vm2521, %v2534, 0.0
    %v2560 = vsel %vm2521, %v2535, 0.0
    %v2561 = vsel %vm2521, %v2536, 0.0
    %v2562 = vsel %vm2521, %v2537, 0.0
    %v2563 = vsel %vm2521, %v2538, 0.0
    %v2564 = vsel %vm2521, %v2539, 0.0
    %v2565 = vsel %vm2521, %v2540, 0.0
    %v2566 = vsel %vm2521, %v2541, 0.0
    %v2567 = vsel %vm2521, %v2542, 0.0
    %v2568 = vsel %vm2521, %v2543, 0.0
    %v2569 = vsel %vm2521, %v2544, 0.0
    %v2570 = vsel %vm2521, %v2545, 0.0
    %v2571 = vsel %vm2521, %v2546, 0.0
    %v2572 = vadd.f32 %v2421, %v2547
    %v2573 = vadd.f32 %v2422, %v2548
    %v2574 = vadd.f32 %v2423, %v2549
    %v2575 = vadd.f32 %v2424, %v2550
    %v2576 = vadd.f32 %v2425, %v2551
    %v2577 = vadd.f32 %v2426, %v2552
    %v2578 = vadd.f32 %v2427, %v2553
    %v2579 = vadd.f32 %v2428, %v2554
    %v2580 = vadd.f32 %v2429, %v2555
    %v2581 = vadd.f32 %v2430, %v2556
    %v2582 = vadd.f32 %v2431, %v2557
    %v2583 = vadd.f32 %v2432, %v2558
    %v2584 = vadd.f32 %v2433, %v2559
    %v2585 = vadd.f32 %v2434, %v2560
    %v2586 = vadd.f32 %v2435, %v2561
    %v2587 = vadd.f32 %v2436, %v2562
    %v2588 = vadd.f32 %v2437, %v2563
    %v2589 = vadd.f32 %v2438, %v2564
    %v2590 = vadd.f32 %v2439, %v2565
    %v2591 = vadd.f32 %v2440, %v2566
    %v2592 = vadd.f32 %v2441, %v2567
    %v2593 = vadd.f32 %v2442, %v2568
    %v2594 = vadd.f32 %v2443, %v2569
    %v2595 = vadd.f32 %v2444, %v2570
    %v2596 = vadd.f32 %v2445, %v2571
    %2597 = vst [vmem:[#allocation2] sm:$0xff] %v2572
    %2598 = vst [vmem:[#allocation2 + $0x8] sm:$0xff] %v2573
    %2599 = vst [vmem:[#allocation2 + $0x10] sm:$0xff] %v2574
    %2600 = vst [vmem:[#allocation2 + $0x18] sm:$0xff] %v2575
    %2601 = vst [vmem:[#allocation2 + $0x20] sm:$0xff] %v2576
    %2602 = vst [vmem:[#allocation2 + $0x28] sm:$0xff] %v2577
    %2603 = vst [vmem:[#allocation2 + $0x30] sm:$0xff] %v2578
    %2604 = vst [vmem:[#allocation2 + $0x38] sm:$0xff] %v2579
    %2605 = vst [vmem:[#allocation2 + $0x40] sm:$0xff] %v2580
    %2606 = vst [vmem:[#allocation2 + $0x48] sm:$0xff] %v2581
    %2607 = vst [vmem:[#allocation2 + $0x50] sm:$0xff] %v2582
    %2608 = vst [vmem:[#allocation2 + $0x58] sm:$0xff] %v2583
    %2609 = vst [vmem:[#allocation2 + $0x60] sm:$0xff] %v2584
    %2610 = vst [vmem:[#allocation2 + $0x68] sm:$0xff] %v2585
    %2611 = vst [vmem:[#allocation2 + $0x70] sm:$0xff] %v2586
    %2612 = vst [vmem:[#allocation2 + $0x78] sm:$0xff] %v2587
    %2613 = vst [vmem:[#allocation2 + $0x80] sm:$0xff] %v2588
    %2614 = vst [vmem:[#allocation2 + $0x88] sm:$0xff] %v2589
    %2615 = vst [vmem:[#allocation2 + $0x90] sm:$0xff] %v2590
    %2616 = vst [vmem:[#allocation2 + $0x98] sm:$0xff] %v2591
    %2617 = vst [vmem:[#allocation2 + $0xa0] sm:$0xff] %v2592
    %2618 = vst [vmem:[#allocation2 + $0xa8] sm:$0xff] %v2593
    %2619 = vst [vmem:[#allocation2 + $0xb0] sm:$0xff] %v2594
    %2620 = vst [vmem:[#allocation2 + $0xb8] sm:$0xff] %v2595
    %2621 = vst [vmem:[#allocation2 + $0xc0] sm:$0xff] %v2596
    // Predicated region
    $region42: #{tpu_custom_call.1} parent=1 // pred_check
      _
    $region43: #{tpu_custom_call.1} parent=1 // pred_check_branch
      %2623 = sbr.rel (0) target = $region45
    $region44: #{tpu_custom_call.1} parent=1 // pred_region
      %s2625 = ssub.s32 3200, 3200
      %2626 = vsyncadd [#allocation3], %s2625
      %s2627 = sshll.u32 [#allocation2], 4
      %s2628 = int_to_ptr.vmem [resolvable:$true] %s2627
      %2633 = dma.vmem_to_hbm [thread:$0]  %s2628, 3200, %s10, [#allocation3], 128, 128, 8
    $region45: #{tpu_custom_call.1} parent=1 // pred_fallthru
      _
    // Predicated region
    $region46: #{tpu_custom_call.1} parent=1 // pred_check
      _
    $region47: #{tpu_custom_call.1} parent=1 // pred_check_branch
      %2635 = sbr.rel (0) target = $region49
    $region48: #{tpu_custom_call.1} parent=1 // pred_region
      %2636 = dma.done [#allocation3], 3200
    $region49: #{tpu_custom_call.1} parent=1 // pred_fallthru
      _
    %2637 = vsyncpa [#allocation3], 1

</llo_original>
